<compile_context>
chip_gen: v5e
topology: v5e:2x2
jax: 0.10.0
libtpu: 0.0.40
codegen_flags: <defaults>
</compile_context>

<pallas_src>
import jax
import jax.numpy as jnp
from jax.experimental import pallas as pl
from jax.experimental.pallas import tpu as pltpu

# Configuration mirroring:
# MobileOneBlock(in_channels=32, out_channels=32, kernel_size=3, stride=1,
#                padding=1, groups=1, inference_mode=False, use_se=True,
#                num_conv_branches=2)
N, CIN, H, W = 2, 32, 16, 16
COUT = 32
K = 3
PAD = 1
NUM_BRANCHES = 2
CRD = int(COUT * 0.0625)          # SEBlock reduce channels = 2
HO, WO = H, W                     # stride=1, padding=K//2
HW = H * W                        # 256 -> lane-dense
EPS = 1e-5
AUXC = 3 + 2 * CRD                # aux columns: [b_fold, be, wr cols, we rows, br]
BR_COL = 2 + 2 * CRD


def mobileone_kernel(x_ref, w_ref, mask_ref, aux_ref, o_ref):
    # x_ref:    (nb, CIN, HW)  f32   channels on sublanes, spatial on lanes
    # w_ref:    (K*K*COUT, CIN) f32  row-block t holds W[kh,kw]^T  (COUT, CIN)
    # mask_ref: (K*K, HW)      f32   per-tap border-validity mask over m = h*W + w
    # aux_ref:  (COUT, AUXC)   f32   packed per-channel vectors (bias, SE params)
    # o_ref:    (nb, COUT, HW) f32
    nb = x_ref.shape[0]

    bias_col = aux_ref[:, 0:1]                       # (COUT, 1) folded conv bias
    be_col = aux_ref[:, 1:2]                         # (COUT, 1) SE expand bias

    for b in range(nb):
        x_b = x_ref[b]                               # (CIN, HW) lane-dense load

        # --- reparameterized KxK conv: K*K accumulating MXU matmuls over
        #     shifted views (shift = XLU roll, out-of-image taps zero-masked) ---
        acc = jnp.zeros((COUT, HW), jnp.float32)
        for t in range(K * K):
            kh, kw = t // K, t % K
            delta = (kh - PAD) * W + (kw - PAD)      # flattened spatial offset
            if delta == 0:
                taps = x_b
            else:
                # taps[:, m] = x[:, m + delta]; wrapped / out-of-image lanes -> 0
                taps = pltpu.roll(x_b, shift=(-delta) % HW, axis=1) * mask_ref[t:t + 1, :]
            wt = w_ref[t * COUT:(t + 1) * COUT, :]   # (COUT, CIN), tile-aligned slice
            acc = acc + jnp.dot(wt, taps, preferred_element_type=jnp.float32)
        y = acc + bias_col                           # (COUT, HW) conv output

        # --- SEBlock on VPU/XLU: global avg pool -> reduce -> ReLU -> expand
        #     -> sigmoid (channels on sublanes; tiny M=1 matmuls would waste MXU) ---
        pooled = jnp.mean(y, axis=1, keepdims=True)  # (COUT, 1) cross-lane reduce
        s = be_col
        for j in range(CRD):
            wr_j = aux_ref[:, 2 + j:3 + j]                       # (COUT, 1)
            br_j = aux_ref[j:j + 1, BR_COL:BR_COL + 1]           # (1, 1)
            r_j = jnp.maximum(
                jnp.sum(wr_j * pooled, axis=0, keepdims=True) + br_j, 0.0)  # (1, 1)
            we_j = aux_ref[:, 2 + CRD + j:3 + CRD + j]           # (COUT, 1)
            s = s + r_j * we_j
        gate = jax.nn.sigmoid(s)                     # (COUT, 1)

        # --- channel scale + final ReLU, lane-dense store ---
        o_ref[b] = jnp.maximum(y * gate, 0.0)


def fold_params(p):
    """Exactly fold every branch (sum of KxK conv+BN, 1x1 conv+BN, identity BN)
    into one KxK conv -- mirrors MobileOneBlock.reparameterize()."""
    assert CIN == COUT, "identity-BN fold requires in_channels == out_channels (groups == 1)"
    c = K // 2
    w = p["w3"].at[c, c].add(p["w1"] + jnp.diag(p["idsc"]))    # (K, K, CIN, COUT)
    b = p["b3"] + p["b1"] + p["idsh"]                          # (COUT,)

    # Per-tap transposed weights: row-block t = W[kh,kw]^T  (COUT, CIN).
    w_packed = jnp.transpose(w, (0, 1, 3, 2)).reshape(K * K * COUT, CIN)

    # Per-tap border-validity masks over flattened spatial index m = h*W + w.
    hh = jnp.arange(H)[:, None]
    ww = jnp.arange(W)[None, :]
    masks = []
    for kh in range(K):
        for kw in range(K):
            dh, dw = kh - PAD, kw - PAD
            valid = ((hh + dh >= 0) & (hh + dh < H) &
                     (ww + dw >= 0) & (ww + dw < W))
            masks.append(valid.astype(jnp.float32).reshape(HW))
    masks = jnp.stack(masks)                                   # (K*K, HW)

    # Packed per-channel vectors, channels on sublanes (match kernel layout).
    aux = jnp.zeros((COUT, AUXC), jnp.float32)
    aux = aux.at[:, 0].set(b)                     # folded conv bias
    aux = aux.at[:, 1].set(p["be"])               # SE expand bias
    for j in range(CRD):
        aux = aux.at[:, 2 + j].set(p["wr"][:, j])         # SE reduce weight column j
        aux = aux.at[:, 2 + CRD + j].set(p["we"][j, :])   # SE expand weight row j
        aux = aux.at[j, BR_COL].set(p["br"][j])           # SE reduce bias
    return dict(w=w_packed, masks=masks, aux=aux)


def _batch_block_size():
    # v7x: 2 TensorCores/chip -> exactly one (parallel) grid step per core.
    # v5e / v6e: single TC -> whole batch in one grid step (nothing to pipeline).
    try:
        kind = jax.devices()[0].device_kind.lower()
    except Exception:
        kind = ""
    if "v7" in kind or "7x" in kind:
        return max(1, (N + 1) // 2)
    return N


def mobileone_block(x_nchw, fp, nb=None):
    if nb is None:
        nb = _batch_block_size()
    assert N % nb == 0
    x_flat = x_nchw.reshape(N, CIN, HW)            # free reshape, no transpose

    flops = 2 * N * HO * WO * CIN * COUT * K * K
    bytes_accessed = 4 * (N * CIN * HW + K * K * COUT * CIN + K * K * HW
                          + COUT * AUXC + N * COUT * HW)

    out_flat = pl.pallas_call(
        mobileone_kernel,
        out_shape=jax.ShapeDtypeStruct((N, COUT, HW), jnp.float32),
        grid=(N // nb,),
        in_specs=[
            pl.BlockSpec((nb, CIN, HW), lambda b: (b, 0, 0)),          # input
            pl.BlockSpec((K * K * COUT, CIN), lambda b: (0, 0)),       # folded weights
            pl.BlockSpec((K * K, HW), lambda b: (0, 0)),               # border masks
            pl.BlockSpec((COUT, AUXC), lambda b: (0, 0)),              # packed vectors
        ],
        out_specs=pl.BlockSpec((nb, COUT, HW), lambda b: (b, 0, 0)),
        compiler_params=pltpu.CompilerParams(
            dimension_semantics=("parallel",)),
        cost_estimate=pl.CostEstimate(flops=flops, transcendentals=N * COUT,
                                      bytes_accessed=bytes_accessed),
    )(x_flat, fp["w"], fp["masks"], fp["aux"])
    return out_flat.reshape(N, COUT, HO, WO)       # free reshape, no transpose


def init_params(key):
    ks = list(jax.random.split(key, 32))
    it = iter(ks)

    def fuse(w, gamma, beta, mean, var):
        t = gamma / jnp.sqrt(var + EPS)            # (COUT,)
        return w * t, beta - mean * t

    def bn_params(n):
        gamma = jax.random.uniform(next(it), (n,), minval=0.5, maxval=1.5)
        beta = jax.random.normal(next(it), (n,)) * 0.1
        mean = jax.random.normal(next(it), (n,)) * 0.1
        var = jax.random.uniform(next(it), (n,), minval=0.5, maxval=1.5)
        return gamma, beta, mean, var

    # rbr_conv branches (KxK conv, no bias) + BN, summed (linear -> exact)
    w3 = jnp.zeros((K, K, CIN, COUT), jnp.float32)
    b3 = jnp.zeros((COUT,), jnp.float32)
    for _ in range(NUM_BRANCHES):
        w = jax.random.normal(next(it), (K, K, CIN, COUT)) * 0.1
        wf, bf = fuse(w, *bn_params(COUT))
        w3, b3 = w3 + wf, b3 + bf

    # rbr_scale: 1x1 conv + BN
    w = jax.random.normal(next(it), (CIN, COUT)) * 0.1
    w1, b1 = fuse(w, *bn_params(COUT))

    # rbr_skip: BatchNorm2d(in_channels) identity branch
    gamma, beta, mean, var = bn_params(CIN)
    idsc = gamma / jnp.sqrt(var + EPS)
    idsh = beta - mean * idsc

    # SEBlock
    wr = jax.random.normal(next(it), (COUT, CRD)) * 0.1
    br = jax.random.normal(next(it), (CRD,)) * 0.1
    we = jax.random.normal(next(it), (CRD, COUT)) * 0.1
    be = jax.random.normal(next(it), (COUT,)) * 0.1

    return dict(w3=w3, b3=b3, w1=w1, b1=b1, idsc=idsc, idsh=idsh,
                wr=wr, br=br, we=we, be=be)


def reference(x, p):
    """Pure-JAX multi-branch reference (unfused), NCHW, f32 everywhere."""
    def conv(x, w_hwio, b, pad):
        y = jax.lax.conv_general_dilated(
            x, w_hwio, (1, 1), [(pad, pad), (pad, pad)],
            dimension_numbers=('NCHW', 'HWIO', 'NCHW'))
        return y + b.reshape(1, -1, 1, 1)

    out = conv(x, p["w3"], p["b3"], PAD)
    out = out + conv(x, p["w1"].reshape(1, 1, CIN, COUT), p["b1"], 0)
    out = out + x * p["idsc"].reshape(1, -1, 1, 1) + p["idsh"].reshape(1, -1, 1, 1)
    pooled = out.mean(axis=(2, 3))
    r = jnp.maximum(pooled @ p["wr"] + p["br"], 0.0)
    s = jax.nn.sigmoid(r @ p["we"] + p["be"])
    out = out * s[:, :, None, None]
    return jnp.maximum(out, 0.0)


if __name__ == "__main__":
    key = jax.random.PRNGKey(0)
    kx, kp = jax.random.split(key)
    x = jax.random.normal(kx, (N, CIN, H, W), jnp.float32)
    params = init_params(kp)
    folded = fold_params(params)

    forward = jax.jit(mobileone_block)
    out = jax.block_until_ready(forward(x, folded))
    ref = jax.block_until_ready(reference(x, params))

    assert out.shape == (N, COUT, HO, WO)
    # Operands are f32; tolerance still covers backends that round MXU inputs
    # to bf16 per pass at default precision (identity-fold term ~O(1) weights).
    max_diff = jnp.max(jnp.abs(out - ref))
    mean_diff = jnp.mean(jnp.abs(out - ref))
    assert max_diff < 5e-2, f"max abs diff {max_diff}"
    assert mean_diff < 5e-3, f"mean abs diff {mean_diff}"
    print("KERNEL_OK")
</pallas_src>

<mosaic_0001>
module attributes {stable_mosaic.version = 11 : i64} {
  func.func @mobileone_kernel(%arg0: i32, %arg1: memref<2x32x256xf32, #tpu.memory_space<vmem>>, %arg2: memref<288x32xf32, #tpu.memory_space<vmem>>, %arg3: memref<9x256xf32, #tpu.memory_space<vmem>>, %arg4: memref<32x7xf32, #tpu.memory_space<vmem>>, %arg5: memref<2x32x256xf32, #tpu.memory_space<vmem>>) attributes {dimension_semantics = [#tpu.dimension_semantics<parallel>], iteration_bounds = array<i64: 1>, scalar_prefetch = 0 : i64, scratch_operands = 0 : i64, tpu.core_type = #tpu.core_type<tc>, window_params = [{transform_indices = @transform_0, window_bounds = array<i64: 2, 32, 256>}, {pipeline_mode = #tpu.pipeline_mode<synchronous>, transform_indices = @transform_1, window_bounds = array<i64: 288, 32>}, {pipeline_mode = #tpu.pipeline_mode<synchronous>, transform_indices = @transform_2, window_bounds = array<i64: 9, 256>}, {pipeline_mode = #tpu.pipeline_mode<synchronous>, transform_indices = @transform_3, window_bounds = array<i64: 32, 7>}, {transform_indices = @transform_4, window_bounds = array<i64: 2, 32, 256>}]} {
    %c0 = arith.constant 0 : index
    %c0_0 = arith.constant 0 : index
    %0 = vector.load %arg4[%c0, %c0_0] : memref<32x7xf32, #tpu.memory_space<vmem>>, vector<32x1xf32>
    %c0_1 = arith.constant 0 : index
    %c1 = arith.constant 1 : index
    %1 = vector.load %arg4[%c0_1, %c1] : memref<32x7xf32, #tpu.memory_space<vmem>>, vector<32x1xf32>
    %c0_2 = arith.constant 0 : index
    %c0_3 = arith.constant 0 : index
    %c0_4 = arith.constant 0 : index
    %2 = vector.load %arg1[%c0_2, %c0_3, %c0_4] : memref<2x32x256xf32, #tpu.memory_space<vmem>>, vector<1x32x256xf32>
    %3 = vector.shape_cast %2 : vector<1x32x256xf32> to vector<32x256xf32>
    %cst = arith.constant 0.000000e+00 : f32
    %4 = vector.broadcast %cst : f32 to vector<32x256xf32>
    %c17_i32 = arith.constant 17 : i32
    %5 = tpu.dynamic_rotate %3 by %c17_i32 dim 1 : vector<32x256xf32>, i32 -> vector<32x256xf32>
    %c0_5 = arith.constant 0 : index
    %c0_6 = arith.constant 0 : index
    %6 = vector.load %arg3[%c0_5, %c0_6] : memref<9x256xf32, #tpu.memory_space<vmem>>, vector<1x256xf32>
    %7 = vector.broadcast %6 : vector<1x256xf32> to vector<32x256xf32>
    %8 = arith.mulf %5, %7 : vector<32x256xf32>
    %c0_7 = arith.constant 0 : index
    %c0_8 = arith.constant 0 : index
    %9 = vector.load %arg2[%c0_7, %c0_8] : memref<288x32xf32, #tpu.memory_space<vmem>>, vector<32x32xf32>
    %cst_9 = arith.constant dense<0.000000e+00> : vector<32x256xf32>
    %10 = tpu.matmul %9, %8, %cst_9 {dimension_numbers = #tpu.dot_dimension_numbers<[1], [0], [0], [1], [0, 0, 1, 1], [], []>} : vector<32x32xf32>, vector<32x256xf32>, vector<32x256xf32> -> vector<32x256xf32>
    %11 = arith.addf %4, %10 : vector<32x256xf32>
    %c16_i32 = arith.constant 16 : i32
    %12 = tpu.dynamic_rotate %3 by %c16_i32 dim 1 : vector<32x256xf32>, i32 -> vector<32x256xf32>
    %c1_10 = arith.constant 1 : index
    %c0_11 = arith.constant 0 : index
    %13 = vector.load %arg3[%c1_10, %c0_11] : memref<9x256xf32, #tpu.memory_space<vmem>>, vector<1x256xf32>
    %14 = vector.broadcast %13 : vector<1x256xf32> to vector<32x256xf32>
    %15 = arith.mulf %12, %14 : vector<32x256xf32>
    %c32 = arith.constant 32 : index
    %c0_12 = arith.constant 0 : index
    %16 = vector.load %arg2[%c32, %c0_12] : memref<288x32xf32, #tpu.memory_space<vmem>>, vector<32x32xf32>
    %cst_13 = arith.constant dense<0.000000e+00> : vector<32x256xf32>
    %17 = tpu.matmul %16, %15, %cst_13 {dimension_numbers = #tpu.dot_dimension_numbers<[1], [0], [0], [1], [0, 0, 1, 1], [], []>} : vector<32x32xf32>, vector<32x256xf32>, vector<32x256xf32> -> vector<32x256xf32>
    %18 = arith.addf %11, %17 : vector<32x256xf32>
    %c15_i32 = arith.constant 15 : i32
    %19 = tpu.dynamic_rotate %3 by %c15_i32 dim 1 : vector<32x256xf32>, i32 -> vector<32x256xf32>
    %c2 = arith.constant 2 : index
    %c0_14 = arith.constant 0 : index
    %20 = vector.load %arg3[%c2, %c0_14] : memref<9x256xf32, #tpu.memory_space<vmem>>, vector<1x256xf32>
    %21 = vector.broadcast %20 : vector<1x256xf32> to vector<32x256xf32>
    %22 = arith.mulf %19, %21 : vector<32x256xf32>
    %c64 = arith.constant 64 : index
    %c0_15 = arith.constant 0 : index
    %23 = vector.load %arg2[%c64, %c0_15] : memref<288x32xf32, #tpu.memory_space<vmem>>, vector<32x32xf32>
    %cst_16 = arith.constant dense<0.000000e+00> : vector<32x256xf32>
    %24 = tpu.matmul %23, %22, %cst_16 {dimension_numbers = #tpu.dot_dimension_numbers<[1], [0], [0], [1], [0, 0, 1, 1], [], []>} : vector<32x32xf32>, vector<32x256xf32>, vector<32x256xf32> -> vector<32x256xf32>
    %25 = arith.addf %18, %24 : vector<32x256xf32>
    %c1_i32 = arith.constant 1 : i32
    %26 = tpu.dynamic_rotate %3 by %c1_i32 dim 1 : vector<32x256xf32>, i32 -> vector<32x256xf32>
    %c3 = arith.constant 3 : index
    %c0_17 = arith.constant 0 : index
    %27 = vector.load %arg3[%c3, %c0_17] : memref<9x256xf32, #tpu.memory_space<vmem>>, vector<1x256xf32>
    %28 = vector.broadcast %27 : vector<1x256xf32> to vector<32x256xf32>
    %29 = arith.mulf %26, %28 : vector<32x256xf32>
    %c96 = arith.constant 96 : index
    %c0_18 = arith.constant 0 : index
    %30 = vector.load %arg2[%c96, %c0_18] : memref<288x32xf32, #tpu.memory_space<vmem>>, vector<32x32xf32>
    %cst_19 = arith.constant dense<0.000000e+00> : vector<32x256xf32>
    %31 = tpu.matmul %30, %29, %cst_19 {dimension_numbers = #tpu.dot_dimension_numbers<[1], [0], [0], [1], [0, 0, 1, 1], [], []>} : vector<32x32xf32>, vector<32x256xf32>, vector<32x256xf32> -> vector<32x256xf32>
    %32 = arith.addf %25, %31 : vector<32x256xf32>
    %c128 = arith.constant 128 : index
    %c0_20 = arith.constant 0 : index
    %33 = vector.load %arg2[%c128, %c0_20] : memref<288x32xf32, #tpu.memory_space<vmem>>, vector<32x32xf32>
    %cst_21 = arith.constant dense<0.000000e+00> : vector<32x256xf32>
    %34 = tpu.matmul %33, %3, %cst_21 {dimension_numbers = #tpu.dot_dimension_numbers<[1], [0], [0], [1], [0, 0, 1, 1], [], []>} : vector<32x32xf32>, vector<32x256xf32>, vector<32x256xf32> -> vector<32x256xf32>
    %35 = arith.addf %32, %34 : vector<32x256xf32>
    %c255_i32 = arith.constant 255 : i32
    %36 = tpu.dynamic_rotate %3 by %c255_i32 dim 1 : vector<32x256xf32>, i32 -> vector<32x256xf32>
    %c5 = arith.constant 5 : index
    %c0_22 = arith.constant 0 : index
    %37 = vector.load %arg3[%c5, %c0_22] : memref<9x256xf32, #tpu.memory_space<vmem>>, vector<1x256xf32>
    %38 = vector.broadcast %37 : vector<1x256xf32> to vector<32x256xf32>
    %39 = arith.mulf %36, %38 : vector<32x256xf32>
    %c160 = arith.constant 160 : index
    %c0_23 = arith.constant 0 : index
    %40 = vector.load %arg2[%c160, %c0_23] : memref<288x32xf32, #tpu.memory_space<vmem>>, vector<32x32xf32>
    %cst_24 = arith.constant dense<0.000000e+00> : vector<32x256xf32>
    %41 = tpu.matmul %40, %39, %cst_24 {dimension_numbers = #tpu.dot_dimension_numbers<[1], [0], [0], [1], [0, 0, 1, 1], [], []>} : vector<32x32xf32>, vector<32x256xf32>, vector<32x256xf32> -> vector<32x256xf32>
    %42 = arith.addf %35, %41 : vector<32x256xf32>
    %c241_i32 = arith.constant 241 : i32
    %43 = tpu.dynamic_rotate %3 by %c241_i32 dim 1 : vector<32x256xf32>, i32 -> vector<32x256xf32>
    %c6 = arith.constant 6 : index
    %c0_25 = arith.constant 0 : index
    %44 = vector.load %arg3[%c6, %c0_25] : memref<9x256xf32, #tpu.memory_space<vmem>>, vector<1x256xf32>
    %45 = vector.broadcast %44 : vector<1x256xf32> to vector<32x256xf32>
    %46 = arith.mulf %43, %45 : vector<32x256xf32>
    %c192 = arith.constant 192 : index
    %c0_26 = arith.constant 0 : index
    %47 = vector.load %arg2[%c192, %c0_26] : memref<288x32xf32, #tpu.memory_space<vmem>>, vector<32x32xf32>
    %cst_27 = arith.constant dense<0.000000e+00> : vector<32x256xf32>
    %48 = tpu.matmul %47, %46, %cst_27 {dimension_numbers = #tpu.dot_dimension_numbers<[1], [0], [0], [1], [0, 0, 1, 1], [], []>} : vector<32x32xf32>, vector<32x256xf32>, vector<32x256xf32> -> vector<32x256xf32>
    %49 = arith.addf %42, %48 : vector<32x256xf32>
    %c240_i32 = arith.constant 240 : i32
    %50 = tpu.dynamic_rotate %3 by %c240_i32 dim 1 : vector<32x256xf32>, i32 -> vector<32x256xf32>
    %c7 = arith.constant 7 : index
    %c0_28 = arith.constant 0 : index
    %51 = vector.load %arg3[%c7, %c0_28] : memref<9x256xf32, #tpu.memory_space<vmem>>, vector<1x256xf32>
    %52 = vector.broadcast %51 : vector<1x256xf32> to vector<32x256xf32>
    %53 = arith.mulf %50, %52 : vector<32x256xf32>
    %c224 = arith.constant 224 : index
    %c0_29 = arith.constant 0 : index
    %54 = vector.load %arg2[%c224, %c0_29] : memref<288x32xf32, #tpu.memory_space<vmem>>, vector<32x32xf32>
    %cst_30 = arith.constant dense<0.000000e+00> : vector<32x256xf32>
    %55 = tpu.matmul %54, %53, %cst_30 {dimension_numbers = #tpu.dot_dimension_numbers<[1], [0], [0], [1], [0, 0, 1, 1], [], []>} : vector<32x32xf32>, vector<32x256xf32>, vector<32x256xf32> -> vector<32x256xf32>
    %56 = arith.addf %49, %55 : vector<32x256xf32>
    %c239_i32 = arith.constant 239 : i32
    %57 = tpu.dynamic_rotate %3 by %c239_i32 dim 1 : vector<32x256xf32>, i32 -> vector<32x256xf32>
    %c8 = arith.constant 8 : index
    %c0_31 = arith.constant 0 : index
    %58 = vector.load %arg3[%c8, %c0_31] : memref<9x256xf32, #tpu.memory_space<vmem>>, vector<1x256xf32>
    %59 = vector.broadcast %58 : vector<1x256xf32> to vector<32x256xf32>
    %60 = arith.mulf %57, %59 : vector<32x256xf32>
    %c256 = arith.constant 256 : index
    %c0_32 = arith.constant 0 : index
    %61 = vector.load %arg2[%c256, %c0_32] : memref<288x32xf32, #tpu.memory_space<vmem>>, vector<32x32xf32>
    %cst_33 = arith.constant dense<0.000000e+00> : vector<32x256xf32>
    %62 = tpu.matmul %61, %60, %cst_33 {dimension_numbers = #tpu.dot_dimension_numbers<[1], [0], [0], [1], [0, 0, 1, 1], [], []>} : vector<32x32xf32>, vector<32x256xf32>, vector<32x256xf32> -> vector<32x256xf32>
    %63 = arith.addf %56, %62 : vector<32x256xf32>
    %64 = vector.broadcast %0 : vector<32x1xf32> to vector<32x256xf32>
    %65 = arith.addf %63, %64 : vector<32x256xf32>
    %cst_34 = arith.constant dense<0.000000e+00> : vector<32xf32>
    %66 = vector.multi_reduction <add>, %65, %cst_34 [1] : vector<32x256xf32> to vector<32xf32>
    %67 = vector.shape_cast %66 : vector<32xf32> to vector<32x1xf32>
    %cst_35 = arith.constant 2.560000e+02 : f32
    %68 = vector.broadcast %cst_35 : f32 to vector<32x1xf32>
    %69 = arith.divf %67, %68 : vector<32x1xf32>
    %c0_36 = arith.constant 0 : index
    %c2_37 = arith.constant 2 : index
    %70 = vector.load %arg4[%c0_36, %c2_37] : memref<32x7xf32, #tpu.memory_space<vmem>>, vector<32x1xf32>
    %c0_38 = arith.constant 0 : index
    %c6_39 = arith.constant 6 : index
    %71 = vector.load %arg4[%c0_38, %c6_39] : memref<32x7xf32, #tpu.memory_space<vmem>>, vector<1x1xf32>
    %72 = arith.mulf %70, %69 : vector<32x1xf32>
    %cst_40 = arith.constant dense<0.000000e+00> : vector<1xf32>
    %73 = vector.multi_reduction <add>, %72, %cst_40 [0] : vector<32x1xf32> to vector<1xf32>
    %74 = vector.shape_cast %73 : vector<1xf32> to vector<1x1xf32>
    %75 = arith.addf %74, %71 : vector<1x1xf32>
    %cst_41 = arith.constant 0.000000e+00 : f32
    %76 = vector.broadcast %cst_41 : f32 to vector<1x1xf32>
    %77 = arith.maximumf %75, %76 : vector<1x1xf32>
    %c0_42 = arith.constant 0 : index
    %c4 = arith.constant 4 : index
    %78 = vector.load %arg4[%c0_42, %c4] : memref<32x7xf32, #tpu.memory_space<vmem>>, vector<32x1xf32>
    %79 = vector.broadcast %77 : vector<1x1xf32> to vector<32x1xf32>
    %80 = arith.mulf %79, %78 : vector<32x1xf32>
    %81 = arith.addf %1, %80 : vector<32x1xf32>
    %c0_43 = arith.constant 0 : index
    %c3_44 = arith.constant 3 : index
    %82 = vector.load %arg4[%c0_43, %c3_44] : memref<32x7xf32, #tpu.memory_space<vmem>>, vector<32x1xf32>
    %c1_45 = arith.constant 1 : index
    %c6_46 = arith.constant 6 : index
    %83 = vector.load %arg4[%c1_45, %c6_46] : memref<32x7xf32, #tpu.memory_space<vmem>>, vector<1x1xf32>
    %84 = arith.mulf %82, %69 : vector<32x1xf32>
    %cst_47 = arith.constant dense<0.000000e+00> : vector<1xf32>
    %85 = vector.multi_reduction <add>, %84, %cst_47 [0] : vector<32x1xf32> to vector<1xf32>
    %86 = vector.shape_cast %85 : vector<1xf32> to vector<1x1xf32>
    %87 = arith.addf %86, %83 : vector<1x1xf32>
    %cst_48 = arith.constant 0.000000e+00 : f32
    %88 = vector.broadcast %cst_48 : f32 to vector<1x1xf32>
    %89 = arith.maximumf %87, %88 : vector<1x1xf32>
    %c0_49 = arith.constant 0 : index
    %c5_50 = arith.constant 5 : index
    %90 = vector.load %arg4[%c0_49, %c5_50] : memref<32x7xf32, #tpu.memory_space<vmem>>, vector<32x1xf32>
    %91 = vector.broadcast %89 : vector<1x1xf32> to vector<32x1xf32>
    %92 = arith.mulf %91, %90 : vector<32x1xf32>
    %93 = arith.addf %81, %92 : vector<32x1xf32>
    %94 = arith.negf %93 : vector<32x1xf32>
    %95 = math.exp %94 : vector<32x1xf32>
    %cst_51 = arith.constant 1.000000e+00 : f32
    %96 = vector.broadcast %cst_51 : f32 to vector<32x1xf32>
    %97 = arith.addf %96, %95 : vector<32x1xf32>
    %98 = arith.divf %96, %97 : vector<32x1xf32>
    %99 = vector.broadcast %98 : vector<32x1xf32> to vector<32x256xf32>
    %100 = arith.mulf %65, %99 : vector<32x256xf32>
    %cst_52 = arith.constant 0.000000e+00 : f32
    %101 = vector.broadcast %cst_52 : f32 to vector<32x256xf32>
    %102 = arith.maximumf %100, %101 : vector<32x256xf32>
    %c0_53 = arith.constant 0 : index
    %c0_54 = arith.constant 0 : index
    %c0_55 = arith.constant 0 : index
    %103 = vector.load %arg5[%c0_53, %c0_54, %c0_55] : memref<2x32x256xf32, #tpu.memory_space<vmem>>, vector<1x32x256xf32>
    %104 = vector.shape_cast %103 : vector<1x32x256xf32> to vector<32x256xf32>
    %105 = vector.shape_cast %102 : vector<32x256xf32> to vector<1x32x256xf32>
    tpu.vector_store %arg5[%c0_53, %c0_54, %c0_55], %105 {strides = array<i32>} : memref<2x32x256xf32, #tpu.memory_space<vmem>>, vector<1x32x256xf32>,
    %c1_56 = arith.constant 1 : index
    %c0_57 = arith.constant 0 : index
    %c0_58 = arith.constant 0 : index
    %106 = vector.load %arg1[%c1_56, %c0_57, %c0_58] : memref<2x32x256xf32, #tpu.memory_space<vmem>>, vector<1x32x256xf32>
    %107 = vector.shape_cast %106 : vector<1x32x256xf32> to vector<32x256xf32>
    %cst_59 = arith.constant 0.000000e+00 : f32
    %108 = vector.broadcast %cst_59 : f32 to vector<32x256xf32>
    %c17_i32_60 = arith.constant 17 : i32
    %109 = tpu.dynamic_rotate %107 by %c17_i32_60 dim 1 : vector<32x256xf32>, i32 -> vector<32x256xf32>
    %c0_61 = arith.constant 0 : index
    %c0_62 = arith.constant 0 : index
    %110 = vector.load %arg3[%c0_61, %c0_62] : memref<9x256xf32, #tpu.memory_space<vmem>>, vector<1x256xf32>
    %111 = vector.broadcast %110 : vector<1x256xf32> to vector<32x256xf32>
    %112 = arith.mulf %109, %111 : vector<32x256xf32>
    %c0_63 = arith.constant 0 : index
    %c0_64 = arith.constant 0 : index
    %113 = vector.load %arg2[%c0_63, %c0_64] : memref<288x32xf32, #tpu.memory_space<vmem>>, vector<32x32xf32>
    %cst_65 = arith.constant dense<0.000000e+00> : vector<32x256xf32>
    %114 = tpu.matmul %113, %112, %cst_65 {dimension_numbers = #tpu.dot_dimension_numbers<[1], [0], [0], [1], [0, 0, 1, 1], [], []>} : vector<32x32xf32>, vector<32x256xf32>, vector<32x256xf32> -> vector<32x256xf32>
    %115 = arith.addf %108, %114 : vector<32x256xf32>
    %c16_i32_66 = arith.constant 16 : i32
    %116 = tpu.dynamic_rotate %107 by %c16_i32_66 dim 1 : vector<32x256xf32>, i32 -> vector<32x256xf32>
    %c1_67 = arith.constant 1 : index
    %c0_68 = arith.constant 0 : index
    %117 = vector.load %arg3[%c1_67, %c0_68] : memref<9x256xf32, #tpu.memory_space<vmem>>, vector<1x256xf32>
    %118 = vector.broadcast %117 : vector<1x256xf32> to vector<32x256xf32>
    %119 = arith.mulf %116, %118 : vector<32x256xf32>
    %c32_69 = arith.constant 32 : index
    %c0_70 = arith.constant 0 : index
    %120 = vector.load %arg2[%c32_69, %c0_70] : memref<288x32xf32, #tpu.memory_space<vmem>>, vector<32x32xf32>
    %cst_71 = arith.constant dense<0.000000e+00> : vector<32x256xf32>
    %121 = tpu.matmul %120, %119, %cst_71 {dimension_numbers = #tpu.dot_dimension_numbers<[1], [0], [0], [1], [0, 0, 1, 1], [], []>} : vector<32x32xf32>, vector<32x256xf32>, vector<32x256xf32> -> vector<32x256xf32>
    %122 = arith.addf %115, %121 : vector<32x256xf32>
    %c15_i32_72 = arith.constant 15 : i32
    %123 = tpu.dynamic_rotate %107 by %c15_i32_72 dim 1 : vector<32x256xf32>, i32 -> vector<32x256xf32>
    %c2_73 = arith.constant 2 : index
    %c0_74 = arith.constant 0 : index
    %124 = vector.load %arg3[%c2_73, %c0_74] : memref<9x256xf32, #tpu.memory_space<vmem>>, vector<1x256xf32>
    %125 = vector.broadcast %124 : vector<1x256xf32> to vector<32x256xf32>
    %126 = arith.mulf %123, %125 : vector<32x256xf32>
    %c64_75 = arith.constant 64 : index
    %c0_76 = arith.constant 0 : index
    %127 = vector.load %arg2[%c64_75, %c0_76] : memref<288x32xf32, #tpu.memory_space<vmem>>, vector<32x32xf32>
    %cst_77 = arith.constant dense<0.000000e+00> : vector<32x256xf32>
    %128 = tpu.matmul %127, %126, %cst_77 {dimension_numbers = #tpu.dot_dimension_numbers<[1], [0], [0], [1], [0, 0, 1, 1], [], []>} : vector<32x32xf32>, vector<32x256xf32>, vector<32x256xf32> -> vector<32x256xf32>
    %129 = arith.addf %122, %128 : vector<32x256xf32>
    %c1_i32_78 = arith.constant 1 : i32
    %130 = tpu.dynamic_rotate %107 by %c1_i32_78 dim 1 : vector<32x256xf32>, i32 -> vector<32x256xf32>
    %c3_79 = arith.constant 3 : index
    %c0_80 = arith.constant 0 : index
    %131 = vector.load %arg3[%c3_79, %c0_80] : memref<9x256xf32, #tpu.memory_space<vmem>>, vector<1x256xf32>
    %132 = vector.broadcast %131 : vector<1x256xf32> to vector<32x256xf32>
    %133 = arith.mulf %130, %132 : vector<32x256xf32>
    %c96_81 = arith.constant 96 : index
    %c0_82 = arith.constant 0 : index
    %134 = vector.load %arg2[%c96_81, %c0_82] : memref<288x32xf32, #tpu.memory_space<vmem>>, vector<32x32xf32>
    %cst_83 = arith.constant dense<0.000000e+00> : vector<32x256xf32>
    %135 = tpu.matmul %134, %133, %cst_83 {dimension_numbers = #tpu.dot_dimension_numbers<[1], [0], [0], [1], [0, 0, 1, 1], [], []>} : vector<32x32xf32>, vector<32x256xf32>, vector<32x256xf32> -> vector<32x256xf32>
    %136 = arith.addf %129, %135 : vector<32x256xf32>
    %c128_84 = arith.constant 128 : index
    %c0_85 = arith.constant 0 : index
    %137 = vector.load %arg2[%c128_84, %c0_85] : memref<288x32xf32, #tpu.memory_space<vmem>>, vector<32x32xf32>
    %cst_86 = arith.constant dense<0.000000e+00> : vector<32x256xf32>
    %138 = tpu.matmul %137, %107, %cst_86 {dimension_numbers = #tpu.dot_dimension_numbers<[1], [0], [0], [1], [0, 0, 1, 1], [], []>} : vector<32x32xf32>, vector<32x256xf32>, vector<32x256xf32> -> vector<32x256xf32>
    %139 = arith.addf %136, %138 : vector<32x256xf32>
    %c255_i32_87 = arith.constant 255 : i32
    %140 = tpu.dynamic_rotate %107 by %c255_i32_87 dim 1 : vector<32x256xf32>, i32 -> vector<32x256xf32>
    %c5_88 = arith.constant 5 : index
    %c0_89 = arith.constant 0 : index
    %141 = vector.load %arg3[%c5_88, %c0_89] : memref<9x256xf32, #tpu.memory_space<vmem>>, vector<1x256xf32>
    %142 = vector.broadcast %141 : vector<1x256xf32> to vector<32x256xf32>
    %143 = arith.mulf %140, %142 : vector<32x256xf32>
    %c160_90 = arith.constant 160 : index
    %c0_91 = arith.constant 0 : index
    %144 = vector.load %arg2[%c160_90, %c0_91] : memref<288x32xf32, #tpu.memory_space<vmem>>, vector<32x32xf32>
    %cst_92 = arith.constant dense<0.000000e+00> : vector<32x256xf32>
    %145 = tpu.matmul %144, %143, %cst_92 {dimension_numbers = #tpu.dot_dimension_numbers<[1], [0], [0], [1], [0, 0, 1, 1], [], []>} : vector<32x32xf32>, vector<32x256xf32>, vector<32x256xf32> -> vector<32x256xf32>
    %146 = arith.addf %139, %145 : vector<32x256xf32>
    %c241_i32_93 = arith.constant 241 : i32
    %147 = tpu.dynamic_rotate %107 by %c241_i32_93 dim 1 : vector<32x256xf32>, i32 -> vector<32x256xf32>
    %c6_94 = arith.constant 6 : index
    %c0_95 = arith.constant 0 : index
    %148 = vector.load %arg3[%c6_94, %c0_95] : memref<9x256xf32, #tpu.memory_space<vmem>>, vector<1x256xf32>
    %149 = vector.broadcast %148 : vector<1x256xf32> to vector<32x256xf32>
    %150 = arith.mulf %147, %149 : vector<32x256xf32>
    %c192_96 = arith.constant 192 : index
    %c0_97 = arith.constant 0 : index
    %151 = vector.load %arg2[%c192_96, %c0_97] : memref<288x32xf32, #tpu.memory_space<vmem>>, vector<32x32xf32>
    %cst_98 = arith.constant dense<0.000000e+00> : vector<32x256xf32>
    %152 = tpu.matmul %151, %150, %cst_98 {dimension_numbers = #tpu.dot_dimension_numbers<[1], [0], [0], [1], [0, 0, 1, 1], [], []>} : vector<32x32xf32>, vector<32x256xf32>, vector<32x256xf32> -> vector<32x256xf32>
    %153 = arith.addf %146, %152 : vector<32x256xf32>
    %c240_i32_99 = arith.constant 240 : i32
    %154 = tpu.dynamic_rotate %107 by %c240_i32_99 dim 1 : vector<32x256xf32>, i32 -> vector<32x256xf32>
    %c7_100 = arith.constant 7 : index
    %c0_101 = arith.constant 0 : index
    %155 = vector.load %arg3[%c7_100, %c0_101] : memref<9x256xf32, #tpu.memory_space<vmem>>, vector<1x256xf32>
    %156 = vector.broadcast %155 : vector<1x256xf32> to vector<32x256xf32>
    %157 = arith.mulf %154, %156 : vector<32x256xf32>
    %c224_102 = arith.constant 224 : index
    %c0_103 = arith.constant 0 : index
    %158 = vector.load %arg2[%c224_102, %c0_103] : memref<288x32xf32, #tpu.memory_space<vmem>>, vector<32x32xf32>
    %cst_104 = arith.constant dense<0.000000e+00> : vector<32x256xf32>
    %159 = tpu.matmul %158, %157, %cst_104 {dimension_numbers = #tpu.dot_dimension_numbers<[1], [0], [0], [1], [0, 0, 1, 1], [], []>} : vector<32x32xf32>, vector<32x256xf32>, vector<32x256xf32> -> vector<32x256xf32>
    %160 = arith.addf %153, %159 : vector<32x256xf32>
    %c239_i32_105 = arith.constant 239 : i32
    %161 = tpu.dynamic_rotate %107 by %c239_i32_105 dim 1 : vector<32x256xf32>, i32 -> vector<32x256xf32>
    %c8_106 = arith.constant 8 : index
    %c0_107 = arith.constant 0 : index
    %162 = vector.load %arg3[%c8_106, %c0_107] : memref<9x256xf32, #tpu.memory_space<vmem>>, vector<1x256xf32>
    %163 = vector.broadcast %162 : vector<1x256xf32> to vector<32x256xf32>
    %164 = arith.mulf %161, %163 : vector<32x256xf32>
    %c256_108 = arith.constant 256 : index
    %c0_109 = arith.constant 0 : index
    %165 = vector.load %arg2[%c256_108, %c0_109] : memref<288x32xf32, #tpu.memory_space<vmem>>, vector<32x32xf32>
    %cst_110 = arith.constant dense<0.000000e+00> : vector<32x256xf32>
    %166 = tpu.matmul %165, %164, %cst_110 {dimension_numbers = #tpu.dot_dimension_numbers<[1], [0], [0], [1], [0, 0, 1, 1], [], []>} : vector<32x32xf32>, vector<32x256xf32>, vector<32x256xf32> -> vector<32x256xf32>
    %167 = arith.addf %160, %166 : vector<32x256xf32>
    %168 = vector.broadcast %0 : vector<32x1xf32> to vector<32x256xf32>
    %169 = arith.addf %167, %168 : vector<32x256xf32>
    %cst_111 = arith.constant dense<0.000000e+00> : vector<32xf32>
    %170 = vector.multi_reduction <add>, %169, %cst_111 [1] : vector<32x256xf32> to vector<32xf32>
    %171 = vector.shape_cast %170 : vector<32xf32> to vector<32x1xf32>
    %cst_112 = arith.constant 2.560000e+02 : f32
    %172 = vector.broadcast %cst_112 : f32 to vector<32x1xf32>
    %173 = arith.divf %171, %172 : vector<32x1xf32>
    %c0_113 = arith.constant 0 : index
    %c2_114 = arith.constant 2 : index
    %174 = vector.load %arg4[%c0_113, %c2_114] : memref<32x7xf32, #tpu.memory_space<vmem>>, vector<32x1xf32>
    %c0_115 = arith.constant 0 : index
    %c6_116 = arith.constant 6 : index
    %175 = vector.load %arg4[%c0_115, %c6_116] : memref<32x7xf32, #tpu.memory_space<vmem>>, vector<1x1xf32>
    %176 = arith.mulf %174, %173 : vector<32x1xf32>
    %cst_117 = arith.constant dense<0.000000e+00> : vector<1xf32>
    %177 = vector.multi_reduction <add>, %176, %cst_117 [0] : vector<32x1xf32> to vector<1xf32>
    %178 = vector.shape_cast %177 : vector<1xf32> to vector<1x1xf32>
    %179 = arith.addf %178, %175 : vector<1x1xf32>
    %cst_118 = arith.constant 0.000000e+00 : f32
    %180 = vector.broadcast %cst_118 : f32 to vector<1x1xf32>
    %181 = arith.maximumf %179, %180 : vector<1x1xf32>
    %c0_119 = arith.constant 0 : index
    %c4_120 = arith.constant 4 : index
    %182 = vector.load %arg4[%c0_119, %c4_120] : memref<32x7xf32, #tpu.memory_space<vmem>>, vector<32x1xf32>
    %183 = vector.broadcast %181 : vector<1x1xf32> to vector<32x1xf32>
    %184 = arith.mulf %183, %182 : vector<32x1xf32>
    %185 = arith.addf %1, %184 : vector<32x1xf32>
    %c0_121 = arith.constant 0 : index
    %c3_122 = arith.constant 3 : index
    %186 = vector.load %arg4[%c0_121, %c3_122] : memref<32x7xf32, #tpu.memory_space<vmem>>, vector<32x1xf32>
    %c1_123 = arith.constant 1 : index
    %c6_124 = arith.constant 6 : index
    %187 = vector.load %arg4[%c1_123, %c6_124] : memref<32x7xf32, #tpu.memory_space<vmem>>, vector<1x1xf32>
    %188 = arith.mulf %186, %173 : vector<32x1xf32>
    %cst_125 = arith.constant dense<0.000000e+00> : vector<1xf32>
    %189 = vector.multi_reduction <add>, %188, %cst_125 [0] : vector<32x1xf32> to vector<1xf32>
    %190 = vector.shape_cast %189 : vector<1xf32> to vector<1x1xf32>
    %191 = arith.addf %190, %187 : vector<1x1xf32>
    %cst_126 = arith.constant 0.000000e+00 : f32
    %192 = vector.broadcast %cst_126 : f32 to vector<1x1xf32>
    %193 = arith.maximumf %191, %192 : vector<1x1xf32>
    %c0_127 = arith.constant 0 : index
    %c5_128 = arith.constant 5 : index
    %194 = vector.load %arg4[%c0_127, %c5_128] : memref<32x7xf32, #tpu.memory_space<vmem>>, vector<32x1xf32>
    %195 = vector.broadcast %193 : vector<1x1xf32> to vector<32x1xf32>
    %196 = arith.mulf %195, %194 : vector<32x1xf32>
    %197 = arith.addf %185, %196 : vector<32x1xf32>
    %198 = arith.negf %197 : vector<32x1xf32>
    %199 = math.exp %198 : vector<32x1xf32>
    %cst_129 = arith.constant 1.000000e+00 : f32
    %200 = vector.broadcast %cst_129 : f32 to vector<32x1xf32>
    %201 = arith.addf %200, %199 : vector<32x1xf32>
    %202 = arith.divf %200, %201 : vector<32x1xf32>
    %203 = vector.broadcast %202 : vector<32x1xf32> to vector<32x256xf32>
    %204 = arith.mulf %169, %203 : vector<32x256xf32>
    %cst_130 = arith.constant 0.000000e+00 : f32
    %205 = vector.broadcast %cst_130 : f32 to vector<32x256xf32>
    %206 = arith.maximumf %204, %205 : vector<32x256xf32>
    %c1_131 = arith.constant 1 : index
    %c0_132 = arith.constant 0 : index
    %c0_133 = arith.constant 0 : index
    %207 = vector.load %arg5[%c1_131, %c0_132, %c0_133] : memref<2x32x256xf32, #tpu.memory_space<vmem>>, vector<1x32x256xf32>
    %208 = vector.shape_cast %207 : vector<1x32x256xf32> to vector<32x256xf32>
    %209 = vector.shape_cast %206 : vector<32x256xf32> to vector<1x32x256xf32>
    tpu.vector_store %arg5[%c1_131, %c0_132, %c0_133], %209 {strides = array<i32>} : memref<2x32x256xf32, #tpu.memory_space<vmem>>, vector<1x32x256xf32>,
    return
  }
  func.func @transform_0(%arg0: i32) -> (i32, i32, i32) {
    %c0_i32 = arith.constant 0 : i32
    %c0_i32_0 = arith.constant 0 : i32
    %c0_i32_1 = arith.constant 0 : i32
    return %arg0, %c0_i32, %c0_i32_0 : i32, i32, i32
  }
  func.func @transform_1(%arg0: i32) -> (i32, i32) {
    %c0_i32 = arith.constant 0 : i32
    %c0_i32_0 = arith.constant 0 : i32
    %c0_i32_1 = arith.constant 0 : i32
    return %c0_i32, %c0_i32_0 : i32, i32
  }
  func.func @transform_2(%arg0: i32) -> (i32, i32) {
    %c0_i32 = arith.constant 0 : i32
    %c0_i32_0 = arith.constant 0 : i32
    %c0_i32_1 = arith.constant 0 : i32
    return %c0_i32, %c0_i32_0 : i32, i32
  }
  func.func @transform_3(%arg0: i32) -> (i32, i32) {
    %c0_i32 = arith.constant 0 : i32
    %c0_i32_0 = arith.constant 0 : i32
    %c0_i32_1 = arith.constant 0 : i32
    return %c0_i32, %c0_i32_0 : i32, i32
  }
  func.func @transform_4(%arg0: i32) -> (i32, i32, i32) {
    %c0_i32 = arith.constant 0 : i32
    %c0_i32_0 = arith.constant 0 : i32
    %c0_i32_1 = arith.constant 0 : i32
    return %arg0, %c0_i32, %c0_i32_0 : i32, i32, i32
  }
}

</mosaic_0001>

<llo_original>
// kernel: mobileone_block.1
$region0: #{mobileone_block.1}
  #allocation0 [shape = 'u32[]', space=smem, size = 0x4, offset = 0x4, fixed_abs, tag = 'smem constant byte address 0x4 - core index']
  #allocation1 [shape = 'u32[72,128]{1,0:T(1,128)}', space=vmem, size = 0x9000, scoped, tag = 'internal scratch']
  %s0 = inlined_call_operand.vmem [shape: f32[2,32,256], index: 0, kind: input, shape index: {}]
  %s1 = inlined_call_operand.vmem [shape: f32[288,32], index: 1, kind: input, shape index: {}]
  %s2 = inlined_call_operand.vmem [shape: f32[9,256], index: 2, kind: input, shape index: {}]
  %s3 = inlined_call_operand.vmem [shape: f32[32,7], index: 3, kind: input, shape index: {}]
  %s4 = inlined_call_operand.vmem [shape: f32[2,32,256], index: 4, kind: output, shape index: {}]
  %s5 = sld [smem:[#allocation0]]
  $region26: #{mobileone_block.1} parent=0
    _
  %s7 = ssub.s32 1, %s5
  %s8 = scalar_select 0, %s7, %s5
  // Predicated region
  $region2: #{mobileone_block.1} parent=0 // pred_check
    _
  $region3: #{mobileone_block.1} parent=0 // pred_check_branch
    %10 = sbr.rel (0) target = $region5
  $region4: #{mobileone_block.1} parent=0 // pred_region
    _
  $region5: #{mobileone_block.1} parent=0 // pred_fallthru
    _
  // Predicated region
  $region6: #{mobileone_block.1} parent=0 // pred_check
    _
  $region7: #{mobileone_block.1} parent=0 // pred_check_branch
    %12 = sbr.rel (0) target = $region9
  $region8: #{mobileone_block.1} parent=0 // pred_region
    _
  $region9: #{mobileone_block.1} parent=0 // pred_fallthru
    _
  // Predicated region
  $region10: #{mobileone_block.1} parent=0 // pred_check
    _
  $region11: #{mobileone_block.1} parent=0 // pred_check_branch
    %14 = sbr.rel (0) target = $region13
  $region12: #{mobileone_block.1} parent=0 // pred_region
    _
  $region13: #{mobileone_block.1} parent=0 // pred_fallthru
    _
  // Predicated region
  $region14: #{mobileone_block.1} parent=0 // pred_check
    _
  $region15: #{mobileone_block.1} parent=0 // pred_check_branch
    %16 = sbr.rel (0) target = $region17
  $region16: #{mobileone_block.1} parent=0 // pred_region
    _
  $region17: #{mobileone_block.1} parent=0 // pred_fallthru
    _
  %v17 = vld [vmem:[%s3] sm:$0xff]
  %v18 = vld [vmem:[%s3 + $0x8] sm:$0xff]
  %v19 = vld [vmem:[%s3 + $0x10] sm:$0xff]
  %v20 = vld [vmem:[%s3 + $0x18] sm:$0xff]
  %v21 = vld [vmem:[%s0] sm:$0xff]
  %v22 = vld [vmem:[%s0 + $0x8] sm:$0xff]
  %v23 = vld [vmem:[%s0 + $0x10] sm:$0xff]
  %v24 = vld [vmem:[%s0 + $0x18] sm:$0xff]
  %v25 = vld [vmem:[%s0 + $0x20] sm:$0xff]
  %v26 = vld [vmem:[%s0 + $0x28] sm:$0xff]
  %v27 = vld [vmem:[%s0 + $0x30] sm:$0xff]
  %v28 = vld [vmem:[%s0 + $0x38] sm:$0xff]
  %29 = vrot.lane.b32.xlu0 %v21, 17
  %v30 = vpop.permute.xlu0 %29
  %31 = vrot.lane.b32.xlu0 %v23, 17
  %v32 = vpop.permute.xlu0 %31
  %33 = vrot.lane.b32.xlu0 %v25, 17
  %v34 = vpop.permute.xlu0 %33
  %35 = vrot.lane.b32.xlu0 %v27, 17
  %v36 = vpop.permute.xlu0 %35
  %37 = vrot.lane.b32.xlu0 %v22, 17
  %v38 = vpop.permute.xlu0 %37
  %39 = vrot.lane.b32.xlu0 %v24, 17
  %v40 = vpop.permute.xlu0 %39
  %41 = vrot.lane.b32.xlu0 %v26, 17
  %v42 = vpop.permute.xlu0 %41
  %43 = vrot.lane.b32.xlu0 %v28, 17
  %v44 = vpop.permute.xlu0 %43
  %v45 = vlaneseq
  %v46 = vand.u32 %v45, 127
  %vm47 = vcmp.lt.s32.totalorder %v46, 17
  %v48 = vsel %vm47, %v30, %v38
  %v49 = vsel %vm47, %v32, %v40
  %v50 = vsel %vm47, %v34, %v42
  %v51 = vsel %vm47, %v36, %v44
  %v52 = vsel %vm47, %v38, %v30
  %v53 = vsel %vm47, %v40, %v32
  %v54 = vsel %vm47, %v42, %v34
  %v55 = vsel %vm47, %v44, %v36
  %v56 = vld [vmem:[%s2] ss:$8 sm:$0x3]
  %v58 = vperm.slane %v56, 0
  %v59 = vperm.slane %v56, 1
  %v62 = vmul.f32 %v52, %v58
  %v63 = vmul.f32 %v48, %v59
  %v64 = vmul.f32 %v53, %v58
  %v65 = vmul.f32 %v49, %v59
  %v66 = vmul.f32 %v54, %v58
  %v67 = vmul.f32 %v50, %v59
  %v68 = vmul.f32 %v55, %v58
  %v69 = vmul.f32 %v51, %v59
  %v70 = vld [vmem:[%s1] sm:$0xff]
  %v71 = vld [vmem:[%s1 + $0x8] sm:$0xff]
  %v72 = vld [vmem:[%s1 + $0x10] sm:$0xff]
  %v73 = vld [vmem:[%s1 + $0x18] sm:$0xff]
  %74 = vrot.lane.b32.xlu0 %v21, 16
  %v75 = vpop.permute.xlu0 %74
  %76 = vrot.lane.b32.xlu0 %v23, 16
  %v77 = vpop.permute.xlu0 %76
  %78 = vrot.lane.b32.xlu0 %v25, 16
  %v79 = vpop.permute.xlu0 %78
  %80 = vrot.lane.b32.xlu0 %v27, 16
  %v81 = vpop.permute.xlu0 %80
  %82 = vrot.lane.b32.xlu0 %v22, 16
  %v83 = vpop.permute.xlu0 %82
  %84 = vrot.lane.b32.xlu0 %v24, 16
  %v85 = vpop.permute.xlu0 %84
  %86 = vrot.lane.b32.xlu0 %v26, 16
  %v87 = vpop.permute.xlu0 %86
  %88 = vrot.lane.b32.xlu0 %v28, 16
  %v89 = vpop.permute.xlu0 %88
  %vm90 = vcmp.lt.s32.totalorder %v46, 16
  %v91 = vsel %vm90, %v75, %v83
  %v92 = vsel %vm90, %v77, %v85
  %v93 = vsel %vm90, %v79, %v87
  %v94 = vsel %vm90, %v81, %v89
  %v95 = vsel %vm90, %v83, %v75
  %v96 = vsel %vm90, %v85, %v77
  %v97 = vsel %vm90, %v87, %v79
  %v98 = vsel %vm90, %v89, %v81
  %s99 = scalar_lea.vmem %s2, 1
  %v100 = vld [vmem:[%s99] ss:$8 sm:$0x3]
  %v102 = vperm.slane %v100, 0
  %v103 = vperm.slane %v100, 1
  %v106 = vmul.f32 %v95, %v102
  %v107 = vmul.f32 %v91, %v103
  %v108 = vmul.f32 %v96, %v102
  %v109 = vmul.f32 %v92, %v103
  %v110 = vmul.f32 %v97, %v102
  %v111 = vmul.f32 %v93, %v103
  %v112 = vmul.f32 %v98, %v102
  %v113 = vmul.f32 %v94, %v103
  %v114 = vld [vmem:[%s1 + $0x20] sm:$0xff]
  %v115 = vld [vmem:[%s1 + $0x28] sm:$0xff]
  %v116 = vld [vmem:[%s1 + $0x30] sm:$0xff]
  %v117 = vld [vmem:[%s1 + $0x38] sm:$0xff]
  %vm118 = vcmask 261120
  %v120 = vsel %vm118, %v114, 0
  %v123 = vsel %vm118, %v115, 0
  %v126 = vsel %vm118, %v116, 0
  %v129 = vsel %vm118, %v117, 0
  %131 = vmatpush.msra.mxu0 0.0
  %132 = vmatpush.msra.mxu0 0.0
  %133 = vmatpush.msra.mxu0 0.0
  %134 = vmatpush.msra.mxu0 0.0
  %135 = vmatpush.msra.mxu0 0.0
  %136 = vmatpush.msra.mxu0 0.0
  %137 = vmatpush.msra.mxu0 0.0
  %138 = vmatpush.msra.mxu0 0.0
  %139 = vmatpush.msra.mxu0 0.0
  %140 = vmatpush.msra.mxu0 0.0
  %141 = vmatpush.msra.mxu0 0.0
  %142 = vmatpush.msra.mxu0 0.0
  %143 = vmatpush.msra.mxu0 %v112
  %144 = vmatpush.msra.mxu0 %v110
  %145 = vmatpush.msra.mxu0 %v108
  %146 = vmatpush.msra.mxu0 %v106
  %147 = vmatmul.f32.gmra.mxu0 %v120
  %v148 = vpop.f32.mrf.mxu0
  %v149 = vadd.f32 0.0, %v148
  %150 = vmatmul.f32.gmra.mxu0 %v123
  %v151 = vpop.f32.mrf.mxu0
  %v152 = vadd.f32 0.0, %v151
  %153 = vmatmul.f32.gmra.mxu0 %v126
  %v154 = vpop.f32.mrf.mxu0
  %v155 = vadd.f32 0.0, %v154
  %156 = vmatmul.f32.gmra.mxu0 %v129
  %v157 = vpop.f32.mrf.mxu0
  %v158 = vadd.f32 0.0, %v157
  %159 = vdwg.mxu0
  %160 = vmatpush.msra.mxu0 0.0
  %161 = vmatpush.msra.mxu0 0.0
  %162 = vmatpush.msra.mxu0 0.0
  %163 = vmatpush.msra.mxu0 0.0
  %164 = vmatpush.msra.mxu0 0.0
  %165 = vmatpush.msra.mxu0 0.0
  %166 = vmatpush.msra.mxu0 0.0
  %167 = vmatpush.msra.mxu0 0.0
  %168 = vmatpush.msra.mxu0 0.0
  %169 = vmatpush.msra.mxu0 0.0
  %170 = vmatpush.msra.mxu0 0.0
  %171 = vmatpush.msra.mxu0 0.0
  %172 = vmatpush.msra.mxu0 %v113
  %173 = vmatpush.msra.mxu0 %v111
  %174 = vmatpush.msra.mxu0 %v109
  %175 = vmatpush.msra.mxu0 %v107
  %176 = vmatmul.f32.gmra.mxu0 %v120
  %v177 = vpop.f32.mrf.mxu0
  %v178 = vadd.f32 0.0, %v177
  %179 = vmatmul.f32.gmra.mxu0 %v123
  %v180 = vpop.f32.mrf.mxu0
  %v181 = vadd.f32 0.0, %v180
  %182 = vmatmul.f32.gmra.mxu0 %v126
  %v183 = vpop.f32.mrf.mxu0
  %v184 = vadd.f32 0.0, %v183
  %185 = vmatmul.f32.gmra.mxu0 %v129
  %v186 = vpop.f32.mrf.mxu0
  %v187 = vadd.f32 0.0, %v186
  %188 = vdwg.mxu0
  %v190 = vsel %vm118, %v70, 0
  %v193 = vsel %vm118, %v71, 0
  %v196 = vsel %vm118, %v72, 0
  %v199 = vsel %vm118, %v73, 0
  %201 = vmatpush.msra.mxu0 0.0
  %202 = vmatpush.msra.mxu0 0.0
  %203 = vmatpush.msra.mxu0 0.0
  %204 = vmatpush.msra.mxu0 0.0
  %205 = vmatpush.msra.mxu0 0.0
  %206 = vmatpush.msra.mxu0 0.0
  %207 = vmatpush.msra.mxu0 0.0
  %208 = vmatpush.msra.mxu0 0.0
  %209 = vmatpush.msra.mxu0 0.0
  %210 = vmatpush.msra.mxu0 0.0
  %211 = vmatpush.msra.mxu0 0.0
  %212 = vmatpush.msra.mxu0 0.0
  %213 = vmatpush.msra.mxu0 %v68
  %214 = vmatpush.msra.mxu0 %v66
  %215 = vmatpush.msra.mxu0 %v64
  %216 = vmatpush.msra.mxu0 %v62
  %217 = vmatmul.f32.gmra.mxu0 %v190
  %v218 = vpop.f32.mrf.mxu0
  %v219 = vadd.f32 %v149, %v218
  %220 = vmatmul.f32.gmra.mxu0 %v193
  %v221 = vpop.f32.mrf.mxu0
  %v222 = vadd.f32 %v152, %v221
  %223 = vmatmul.f32.gmra.mxu0 %v196
  %v224 = vpop.f32.mrf.mxu0
  %v225 = vadd.f32 %v155, %v224
  %226 = vmatmul.f32.gmra.mxu0 %v199
  %v227 = vpop.f32.mrf.mxu0
  %v228 = vadd.f32 %v158, %v227
  %229 = vdwg.mxu0
  %230 = vmatpush.msra.mxu0 0.0
  %231 = vmatpush.msra.mxu0 0.0
  %232 = vmatpush.msra.mxu0 0.0
  %233 = vmatpush.msra.mxu0 0.0
  %234 = vmatpush.msra.mxu0 0.0
  %235 = vmatpush.msra.mxu0 0.0
  %236 = vmatpush.msra.mxu0 0.0
  %237 = vmatpush.msra.mxu0 0.0
  %238 = vmatpush.msra.mxu0 0.0
  %239 = vmatpush.msra.mxu0 0.0
  %240 = vmatpush.msra.mxu0 0.0
  %241 = vmatpush.msra.mxu0 0.0
  %242 = vmatpush.msra.mxu0 %v69
  %243 = vmatpush.msra.mxu0 %v67
  %244 = vmatpush.msra.mxu0 %v65
  %245 = vmatpush.msra.mxu0 %v63
  %246 = vmatmul.f32.gmra.mxu0 %v190
  %v247 = vpop.f32.mrf.mxu0
  %v248 = vadd.f32 %v178, %v247
  %249 = vmatmul.f32.gmra.mxu0 %v193
  %v250 = vpop.f32.mrf.mxu0
  %v251 = vadd.f32 %v181, %v250
  %252 = vmatmul.f32.gmra.mxu0 %v196
  %v253 = vpop.f32.mrf.mxu0
  %v254 = vadd.f32 %v184, %v253
  %255 = vmatmul.f32.gmra.mxu0 %v199
  %v256 = vpop.f32.mrf.mxu0
  %v257 = vadd.f32 %v187, %v256
  %258 = vdwg.mxu0
  %259 = vrot.lane.b32.xlu0 %v21, 15
  %v260 = vpop.permute.xlu0 %259
  %261 = vrot.lane.b32.xlu0 %v23, 15
  %v262 = vpop.permute.xlu0 %261
  %263 = vrot.lane.b32.xlu0 %v25, 15
  %v264 = vpop.permute.xlu0 %263
  %265 = vrot.lane.b32.xlu0 %v27, 15
  %v266 = vpop.permute.xlu0 %265
  %267 = vrot.lane.b32.xlu0 %v22, 15
  %v268 = vpop.permute.xlu0 %267
  %269 = vrot.lane.b32.xlu0 %v24, 15
  %v270 = vpop.permute.xlu0 %269
  %271 = vrot.lane.b32.xlu0 %v26, 15
  %v272 = vpop.permute.xlu0 %271
  %273 = vrot.lane.b32.xlu0 %v28, 15
  %v274 = vpop.permute.xlu0 %273
  %vm275 = vcmp.lt.s32.totalorder %v46, 15
  %v276 = vsel %vm275, %v260, %v268
  %v277 = vsel %vm275, %v262, %v270
  %v278 = vsel %vm275, %v264, %v272
  %v279 = vsel %vm275, %v266, %v274
  %v280 = vsel %vm275, %v268, %v260
  %v281 = vsel %vm275, %v270, %v262
  %v282 = vsel %vm275, %v272, %v264
  %v283 = vsel %vm275, %v274, %v266
  %s284 = scalar_lea.vmem %s2, 2
  %v285 = vld [vmem:[%s284] ss:$8 sm:$0x3]
  %v287 = vperm.slane %v285, 0
  %v288 = vperm.slane %v285, 1
  %v291 = vmul.f32 %v280, %v287
  %v292 = vmul.f32 %v276, %v288
  %v293 = vmul.f32 %v281, %v287
  %v294 = vmul.f32 %v277, %v288
  %v295 = vmul.f32 %v282, %v287
  %v296 = vmul.f32 %v278, %v288
  %v297 = vmul.f32 %v283, %v287
  %v298 = vmul.f32 %v279, %v288
  %v299 = vld [vmem:[%s1 + $0x40] sm:$0xff]
  %v300 = vld [vmem:[%s1 + $0x48] sm:$0xff]
  %v301 = vld [vmem:[%s1 + $0x50] sm:$0xff]
  %v302 = vld [vmem:[%s1 + $0x58] sm:$0xff]
  %v304 = vsel %vm118, %v299, 0
  %v307 = vsel %vm118, %v300, 0
  %v310 = vsel %vm118, %v301, 0
  %v313 = vsel %vm118, %v302, 0
  %315 = vmatpush.msra.mxu0 0.0
  %316 = vmatpush.msra.mxu0 0.0
  %317 = vmatpush.msra.mxu0 0.0
  %318 = vmatpush.msra.mxu0 0.0
  %319 = vmatpush.msra.mxu0 0.0
  %320 = vmatpush.msra.mxu0 0.0
  %321 = vmatpush.msra.mxu0 0.0
  %322 = vmatpush.msra.mxu0 0.0
  %323 = vmatpush.msra.mxu0 0.0
  %324 = vmatpush.msra.mxu0 0.0
  %325 = vmatpush.msra.mxu0 0.0
  %326 = vmatpush.msra.mxu0 0.0
  %327 = vmatpush.msra.mxu0 %v297
  %328 = vmatpush.msra.mxu0 %v295
  %329 = vmatpush.msra.mxu0 %v293
  %330 = vmatpush.msra.mxu0 %v291
  %331 = vmatmul.f32.gmra.mxu0 %v304
  %v332 = vpop.f32.mrf.mxu0
  %v333 = vadd.f32 0.0, %v332
  %334 = vmatmul.f32.gmra.mxu0 %v307
  %v335 = vpop.f32.mrf.mxu0
  %v336 = vadd.f32 0.0, %v335
  %337 = vmatmul.f32.gmra.mxu0 %v310
  %v338 = vpop.f32.mrf.mxu0
  %v339 = vadd.f32 0.0, %v338
  %340 = vmatmul.f32.gmra.mxu0 %v313
  %v341 = vpop.f32.mrf.mxu0
  %v342 = vadd.f32 0.0, %v341
  %343 = vdwg.mxu0
  %344 = vmatpush.msra.mxu0 0.0
  %345 = vmatpush.msra.mxu0 0.0
  %346 = vmatpush.msra.mxu0 0.0
  %347 = vmatpush.msra.mxu0 0.0
  %348 = vmatpush.msra.mxu0 0.0
  %349 = vmatpush.msra.mxu0 0.0
  %350 = vmatpush.msra.mxu0 0.0
  %351 = vmatpush.msra.mxu0 0.0
  %352 = vmatpush.msra.mxu0 0.0
  %353 = vmatpush.msra.mxu0 0.0
  %354 = vmatpush.msra.mxu0 0.0
  %355 = vmatpush.msra.mxu0 0.0
  %356 = vmatpush.msra.mxu0 %v298
  %357 = vmatpush.msra.mxu0 %v296
  %358 = vmatpush.msra.mxu0 %v294
  %359 = vmatpush.msra.mxu0 %v292
  %360 = vmatmul.f32.gmra.mxu0 %v304
  %v361 = vpop.f32.mrf.mxu0
  %v362 = vadd.f32 0.0, %v361
  %363 = vmatmul.f32.gmra.mxu0 %v307
  %v364 = vpop.f32.mrf.mxu0
  %v365 = vadd.f32 0.0, %v364
  %366 = vmatmul.f32.gmra.mxu0 %v310
  %v367 = vpop.f32.mrf.mxu0
  %v368 = vadd.f32 0.0, %v367
  %369 = vmatmul.f32.gmra.mxu0 %v313
  %v370 = vpop.f32.mrf.mxu0
  %v371 = vadd.f32 0.0, %v370
  %372 = vdwg.mxu0
  %v373 = vadd.f32 %v219, %v333
  %v374 = vadd.f32 %v248, %v362
  %v375 = vadd.f32 %v222, %v336
  %v376 = vadd.f32 %v251, %v365
  %v377 = vadd.f32 %v225, %v339
  %v378 = vadd.f32 %v254, %v368
  %v379 = vadd.f32 %v228, %v342
  %v380 = vadd.f32 %v257, %v371
  %381 = vrot.lane.b32.xlu0 %v21, 1
  %v382 = vpop.permute.xlu0 %381
  %383 = vrot.lane.b32.xlu0 %v23, 1
  %v384 = vpop.permute.xlu0 %383
  %385 = vrot.lane.b32.xlu0 %v25, 1
  %v386 = vpop.permute.xlu0 %385
  %387 = vrot.lane.b32.xlu0 %v27, 1
  %v388 = vpop.permute.xlu0 %387
  %389 = vrot.lane.b32.xlu0 %v22, 1
  %v390 = vpop.permute.xlu0 %389
  %391 = vrot.lane.b32.xlu0 %v24, 1
  %v392 = vpop.permute.xlu0 %391
  %393 = vrot.lane.b32.xlu0 %v26, 1
  %v394 = vpop.permute.xlu0 %393
  %395 = vrot.lane.b32.xlu0 %v28, 1
  %v396 = vpop.permute.xlu0 %395
  %vm397 = vcmp.lt.s32.totalorder %v46, 1
  %v398 = vsel %vm397, %v382, %v390
  %v399 = vsel %vm397, %v384, %v392
  %v400 = vsel %vm397, %v386, %v394
  %v401 = vsel %vm397, %v388, %v396
  %v402 = vsel %vm397, %v390, %v382
  %v403 = vsel %vm397, %v392, %v384
  %v404 = vsel %vm397, %v394, %v386
  %v405 = vsel %vm397, %v396, %v388
  %s406 = scalar_lea.vmem %s2, 3
  %v407 = vld [vmem:[%s406] ss:$8 sm:$0x3]
  %v409 = vperm.slane %v407, 0
  %v410 = vperm.slane %v407, 1
  %v413 = vmul.f32 %v402, %v409
  %v414 = vmul.f32 %v398, %v410
  %v415 = vmul.f32 %v403, %v409
  %v416 = vmul.f32 %v399, %v410
  %v417 = vmul.f32 %v404, %v409
  %v418 = vmul.f32 %v400, %v410
  %v419 = vmul.f32 %v405, %v409
  %v420 = vmul.f32 %v401, %v410
  %v421 = vld [vmem:[%s1 + $0x60] sm:$0xff]
  %v422 = vld [vmem:[%s1 + $0x68] sm:$0xff]
  %v423 = vld [vmem:[%s1 + $0x70] sm:$0xff]
  %v424 = vld [vmem:[%s1 + $0x78] sm:$0xff]
  %v426 = vsel %vm118, %v421, 0
  %v429 = vsel %vm118, %v422, 0
  %v432 = vsel %vm118, %v423, 0
  %v435 = vsel %vm118, %v424, 0
  %437 = vmatpush.msra.mxu0 0.0
  %438 = vmatpush.msra.mxu0 0.0
  %439 = vmatpush.msra.mxu0 0.0
  %440 = vmatpush.msra.mxu0 0.0
  %441 = vmatpush.msra.mxu0 0.0
  %442 = vmatpush.msra.mxu0 0.0
  %443 = vmatpush.msra.mxu0 0.0
  %444 = vmatpush.msra.mxu0 0.0
  %445 = vmatpush.msra.mxu0 0.0
  %446 = vmatpush.msra.mxu0 0.0
  %447 = vmatpush.msra.mxu0 0.0
  %448 = vmatpush.msra.mxu0 0.0
  %449 = vmatpush.msra.mxu0 %v419
  %450 = vmatpush.msra.mxu0 %v417
  %451 = vmatpush.msra.mxu0 %v415
  %452 = vmatpush.msra.mxu0 %v413
  %453 = vmatmul.f32.gmra.mxu0 %v426
  %v454 = vpop.f32.mrf.mxu0
  %v455 = vadd.f32 0.0, %v454
  %456 = vmatmul.f32.gmra.mxu0 %v429
  %v457 = vpop.f32.mrf.mxu0
  %v458 = vadd.f32 0.0, %v457
  %459 = vmatmul.f32.gmra.mxu0 %v432
  %v460 = vpop.f32.mrf.mxu0
  %v461 = vadd.f32 0.0, %v460
  %462 = vmatmul.f32.gmra.mxu0 %v435
  %v463 = vpop.f32.mrf.mxu0
  %v464 = vadd.f32 0.0, %v463
  %465 = vdwg.mxu0
  %466 = vmatpush.msra.mxu0 0.0
  %467 = vmatpush.msra.mxu0 0.0
  %468 = vmatpush.msra.mxu0 0.0
  %469 = vmatpush.msra.mxu0 0.0
  %470 = vmatpush.msra.mxu0 0.0
  %471 = vmatpush.msra.mxu0 0.0
  %472 = vmatpush.msra.mxu0 0.0
  %473 = vmatpush.msra.mxu0 0.0
  %474 = vmatpush.msra.mxu0 0.0
  %475 = vmatpush.msra.mxu0 0.0
  %476 = vmatpush.msra.mxu0 0.0
  %477 = vmatpush.msra.mxu0 0.0
  %478 = vmatpush.msra.mxu0 %v420
  %479 = vmatpush.msra.mxu0 %v418
  %480 = vmatpush.msra.mxu0 %v416
  %481 = vmatpush.msra.mxu0 %v414
  %482 = vmatmul.f32.gmra.mxu0 %v426
  %v483 = vpop.f32.mrf.mxu0
  %v484 = vadd.f32 0.0, %v483
  %485 = vmatmul.f32.gmra.mxu0 %v429
  %v486 = vpop.f32.mrf.mxu0
  %v487 = vadd.f32 0.0, %v486
  %488 = vmatmul.f32.gmra.mxu0 %v432
  %v489 = vpop.f32.mrf.mxu0
  %v490 = vadd.f32 0.0, %v489
  %491 = vmatmul.f32.gmra.mxu0 %v435
  %v492 = vpop.f32.mrf.mxu0
  %v493 = vadd.f32 0.0, %v492
  %494 = vdwg.mxu0
  %v495 = vadd.f32 %v373, %v455
  %v496 = vadd.f32 %v374, %v484
  %v497 = vadd.f32 %v375, %v458
  %v498 = vadd.f32 %v376, %v487
  %v499 = vadd.f32 %v377, %v461
  %v500 = vadd.f32 %v378, %v490
  %v501 = vadd.f32 %v379, %v464
  %v502 = vadd.f32 %v380, %v493
  %v503 = vld [vmem:[%s1 + $0x80] sm:$0xff]
  %v504 = vld [vmem:[%s1 + $0x88] sm:$0xff]
  %v505 = vld [vmem:[%s1 + $0x90] sm:$0xff]
  %v506 = vld [vmem:[%s1 + $0x98] sm:$0xff]
  %v508 = vsel %vm118, %v503, 0
  %v511 = vsel %vm118, %v504, 0
  %v514 = vsel %vm118, %v505, 0
  %v517 = vsel %vm118, %v506, 0
  %519 = vmatpush.msra.mxu0 0.0
  %520 = vmatpush.msra.mxu0 0.0
  %521 = vmatpush.msra.mxu0 0.0
  %522 = vmatpush.msra.mxu0 0.0
  %523 = vmatpush.msra.mxu0 0.0
  %524 = vmatpush.msra.mxu0 0.0
  %525 = vmatpush.msra.mxu0 0.0
  %526 = vmatpush.msra.mxu0 0.0
  %527 = vmatpush.msra.mxu0 0.0
  %528 = vmatpush.msra.mxu0 0.0
  %529 = vmatpush.msra.mxu0 0.0
  %530 = vmatpush.msra.mxu0 0.0
  %531 = vmatpush.msra.mxu0 %v27
  %532 = vmatpush.msra.mxu0 %v25
  %533 = vmatpush.msra.mxu0 %v23
  %534 = vmatpush.msra.mxu0 %v21
  %535 = vmatmul.f32.gmra.mxu0 %v508
  %v536 = vpop.f32.mrf.mxu0
  %v537 = vadd.f32 0.0, %v536
  %538 = vmatmul.f32.gmra.mxu0 %v511
  %v539 = vpop.f32.mrf.mxu0
  %v540 = vadd.f32 0.0, %v539
  %541 = vmatmul.f32.gmra.mxu0 %v514
  %v542 = vpop.f32.mrf.mxu0
  %v543 = vadd.f32 0.0, %v542
  %544 = vmatmul.f32.gmra.mxu0 %v517
  %v545 = vpop.f32.mrf.mxu0
  %v546 = vadd.f32 0.0, %v545
  %547 = vdwg.mxu0
  %548 = vmatpush.msra.mxu0 0.0
  %549 = vmatpush.msra.mxu0 0.0
  %550 = vmatpush.msra.mxu0 0.0
  %551 = vmatpush.msra.mxu0 0.0
  %552 = vmatpush.msra.mxu0 0.0
  %553 = vmatpush.msra.mxu0 0.0
  %554 = vmatpush.msra.mxu0 0.0
  %555 = vmatpush.msra.mxu0 0.0
  %556 = vmatpush.msra.mxu0 0.0
  %557 = vmatpush.msra.mxu0 0.0
  %558 = vmatpush.msra.mxu0 0.0
  %559 = vmatpush.msra.mxu0 0.0
  %560 = vmatpush.msra.mxu0 %v28
  %561 = vmatpush.msra.mxu0 %v26
  %562 = vmatpush.msra.mxu0 %v24
  %563 = vmatpush.msra.mxu0 %v22
  %564 = vmatmul.f32.gmra.mxu0 %v508
  %v565 = vpop.f32.mrf.mxu0
  %v566 = vadd.f32 0.0, %v565
  %567 = vmatmul.f32.gmra.mxu0 %v511
  %v568 = vpop.f32.mrf.mxu0
  %v569 = vadd.f32 0.0, %v568
  %570 = vmatmul.f32.gmra.mxu0 %v514
  %v571 = vpop.f32.mrf.mxu0
  %v572 = vadd.f32 0.0, %v571
  %573 = vmatmul.f32.gmra.mxu0 %v517
  %v574 = vpop.f32.mrf.mxu0
  %v575 = vadd.f32 0.0, %v574
  %576 = vdwg.mxu0
  %v577 = vadd.f32 %v495, %v537
  %v578 = vadd.f32 %v496, %v566
  %v579 = vadd.f32 %v497, %v540
  %v580 = vadd.f32 %v498, %v569
  %v581 = vadd.f32 %v499, %v543
  %v582 = vadd.f32 %v500, %v572
  %v583 = vadd.f32 %v501, %v546
  %v584 = vadd.f32 %v502, %v575
  %585 = vrot.lane.b32.xlu0 %v21, 127
  %v586 = vpop.permute.xlu0 %585
  %587 = vrot.lane.b32.xlu0 %v23, 127
  %v588 = vpop.permute.xlu0 %587
  %589 = vrot.lane.b32.xlu0 %v25, 127
  %v590 = vpop.permute.xlu0 %589
  %591 = vrot.lane.b32.xlu0 %v27, 127
  %v592 = vpop.permute.xlu0 %591
  %593 = vrot.lane.b32.xlu0 %v22, 127
  %v594 = vpop.permute.xlu0 %593
  %595 = vrot.lane.b32.xlu0 %v24, 127
  %v596 = vpop.permute.xlu0 %595
  %597 = vrot.lane.b32.xlu0 %v26, 127
  %v598 = vpop.permute.xlu0 %597
  %599 = vrot.lane.b32.xlu0 %v28, 127
  %v600 = vpop.permute.xlu0 %599
  %vm601 = vcmp.lt.s32.totalorder %v46, 127
  %v602 = vsel %vm601, %v586, %v594
  %v603 = vsel %vm601, %v588, %v596
  %v604 = vsel %vm601, %v590, %v598
  %v605 = vsel %vm601, %v592, %v600
  %v606 = vsel %vm601, %v594, %v586
  %v607 = vsel %vm601, %v596, %v588
  %v608 = vsel %vm601, %v598, %v590
  %v609 = vsel %vm601, %v600, %v592
  %s610 = scalar_lea.vmem %s2, 5
  %v611 = vld [vmem:[%s610] ss:$8 sm:$0x3]
  %v613 = vperm.slane %v611, 0
  %v614 = vperm.slane %v611, 1
  %v617 = vmul.f32 %v602, %v613
  %v618 = vmul.f32 %v606, %v614
  %v619 = vmul.f32 %v603, %v613
  %v620 = vmul.f32 %v607, %v614
  %v621 = vmul.f32 %v604, %v613
  %v622 = vmul.f32 %v608, %v614
  %v623 = vmul.f32 %v605, %v613
  %v624 = vmul.f32 %v609, %v614
  %v625 = vld [vmem:[%s1 + $0xa0] sm:$0xff]
  %v626 = vld [vmem:[%s1 + $0xa8] sm:$0xff]
  %v627 = vld [vmem:[%s1 + $0xb0] sm:$0xff]
  %v628 = vld [vmem:[%s1 + $0xb8] sm:$0xff]
  %v630 = vsel %vm118, %v625, 0
  %v633 = vsel %vm118, %v626, 0
  %v636 = vsel %vm118, %v627, 0
  %v639 = vsel %vm118, %v628, 0
  %641 = vmatpush.msra.mxu0 0.0
  %642 = vmatpush.msra.mxu0 0.0
  %643 = vmatpush.msra.mxu0 0.0
  %644 = vmatpush.msra.mxu0 0.0
  %645 = vmatpush.msra.mxu0 0.0
  %646 = vmatpush.msra.mxu0 0.0
  %647 = vmatpush.msra.mxu0 0.0
  %648 = vmatpush.msra.mxu0 0.0
  %649 = vmatpush.msra.mxu0 0.0
  %650 = vmatpush.msra.mxu0 0.0
  %651 = vmatpush.msra.mxu0 0.0
  %652 = vmatpush.msra.mxu0 0.0
  %653 = vmatpush.msra.mxu0 %v623
  %654 = vmatpush.msra.mxu0 %v621
  %655 = vmatpush.msra.mxu0 %v619
  %656 = vmatpush.msra.mxu0 %v617
  %657 = vmatmul.f32.gmra.mxu0 %v630
  %v658 = vpop.f32.mrf.mxu0
  %v659 = vadd.f32 0.0, %v658
  %660 = vmatmul.f32.gmra.mxu0 %v633
  %v661 = vpop.f32.mrf.mxu0
  %v662 = vadd.f32 0.0, %v661
  %663 = vmatmul.f32.gmra.mxu0 %v636
  %v664 = vpop.f32.mrf.mxu0
  %v665 = vadd.f32 0.0, %v664
  %666 = vmatmul.f32.gmra.mxu0 %v639
  %v667 = vpop.f32.mrf.mxu0
  %v668 = vadd.f32 0.0, %v667
  %669 = vdwg.mxu0
  %670 = vmatpush.msra.mxu0 0.0
  %671 = vmatpush.msra.mxu0 0.0
  %672 = vmatpush.msra.mxu0 0.0
  %673 = vmatpush.msra.mxu0 0.0
  %674 = vmatpush.msra.mxu0 0.0
  %675 = vmatpush.msra.mxu0 0.0
  %676 = vmatpush.msra.mxu0 0.0
  %677 = vmatpush.msra.mxu0 0.0
  %678 = vmatpush.msra.mxu0 0.0
  %679 = vmatpush.msra.mxu0 0.0
  %680 = vmatpush.msra.mxu0 0.0
  %681 = vmatpush.msra.mxu0 0.0
  %682 = vmatpush.msra.mxu0 %v624
  %683 = vmatpush.msra.mxu0 %v622
  %684 = vmatpush.msra.mxu0 %v620
  %685 = vmatpush.msra.mxu0 %v618
  %686 = vmatmul.f32.gmra.mxu0 %v630
  %v687 = vpop.f32.mrf.mxu0
  %v688 = vadd.f32 0.0, %v687
  %689 = vmatmul.f32.gmra.mxu0 %v633
  %v690 = vpop.f32.mrf.mxu0
  %v691 = vadd.f32 0.0, %v690
  %692 = vmatmul.f32.gmra.mxu0 %v636
  %v693 = vpop.f32.mrf.mxu0
  %v694 = vadd.f32 0.0, %v693
  %695 = vmatmul.f32.gmra.mxu0 %v639
  %v696 = vpop.f32.mrf.mxu0
  %v697 = vadd.f32 0.0, %v696
  %698 = vdwg.mxu0
  %v699 = vadd.f32 %v577, %v659
  %v700 = vadd.f32 %v578, %v688
  %v701 = vadd.f32 %v579, %v662
  %v702 = vadd.f32 %v580, %v691
  %v703 = vadd.f32 %v581, %v665
  %v704 = vadd.f32 %v582, %v694
  %v705 = vadd.f32 %v583, %v668
  %v706 = vadd.f32 %v584, %v697
  %707 = vrot.lane.b32.xlu0 %v21, 113
  %v708 = vpop.permute.xlu0 %707
  %709 = vrot.lane.b32.xlu0 %v23, 113
  %v710 = vpop.permute.xlu0 %709
  %711 = vrot.lane.b32.xlu0 %v25, 113
  %v712 = vpop.permute.xlu0 %711
  %713 = vrot.lane.b32.xlu0 %v27, 113
  %v714 = vpop.permute.xlu0 %713
  %715 = vrot.lane.b32.xlu0 %v22, 113
  %v716 = vpop.permute.xlu0 %715
  %717 = vrot.lane.b32.xlu0 %v24, 113
  %v718 = vpop.permute.xlu0 %717
  %719 = vrot.lane.b32.xlu0 %v26, 113
  %v720 = vpop.permute.xlu0 %719
  %721 = vrot.lane.b32.xlu0 %v28, 113
  %v722 = vpop.permute.xlu0 %721
  %vm723 = vcmp.lt.s32.totalorder %v46, 113
  %v724 = vsel %vm723, %v708, %v716
  %v725 = vsel %vm723, %v710, %v718
  %v726 = vsel %vm723, %v712, %v720
  %v727 = vsel %vm723, %v714, %v722
  %v728 = vsel %vm723, %v716, %v708
  %v729 = vsel %vm723, %v718, %v710
  %v730 = vsel %vm723, %v720, %v712
  %v731 = vsel %vm723, %v722, %v714
  %s732 = scalar_lea.vmem %s2, 6
  %v733 = vld [vmem:[%s732] ss:$8 sm:$0x3]
  %v735 = vperm.slane %v733, 0
  %v736 = vperm.slane %v733, 1
  %v739 = vmul.f32 %v724, %v735
  %v740 = vmul.f32 %v728, %v736
  %v741 = vmul.f32 %v725, %v735
  %v742 = vmul.f32 %v729, %v736
  %v743 = vmul.f32 %v726, %v735
  %v744 = vmul.f32 %v730, %v736
  %v745 = vmul.f32 %v727, %v735
  %v746 = vmul.f32 %v731, %v736
  %v747 = vld [vmem:[%s1 + $0xc0] sm:$0xff]
  %v748 = vld [vmem:[%s1 + $0xc8] sm:$0xff]
  %v749 = vld [vmem:[%s1 + $0xd0] sm:$0xff]
  %v750 = vld [vmem:[%s1 + $0xd8] sm:$0xff]
  %v752 = vsel %vm118, %v747, 0
  %v755 = vsel %vm118, %v748, 0
  %v758 = vsel %vm118, %v749, 0
  %v761 = vsel %vm118, %v750, 0
  %763 = vmatpush.msra.mxu0 0.0
  %764 = vmatpush.msra.mxu0 0.0
  %765 = vmatpush.msra.mxu0 0.0
  %766 = vmatpush.msra.mxu0 0.0
  %767 = vmatpush.msra.mxu0 0.0
  %768 = vmatpush.msra.mxu0 0.0
  %769 = vmatpush.msra.mxu0 0.0
  %770 = vmatpush.msra.mxu0 0.0
  %771 = vmatpush.msra.mxu0 0.0
  %772 = vmatpush.msra.mxu0 0.0
  %773 = vmatpush.msra.mxu0 0.0
  %774 = vmatpush.msra.mxu0 0.0
  %775 = vmatpush.msra.mxu0 %v745
  %776 = vmatpush.msra.mxu0 %v743
  %777 = vmatpush.msra.mxu0 %v741
  %778 = vmatpush.msra.mxu0 %v739
  %779 = vmatmul.f32.gmra.mxu0 %v752
  %v780 = vpop.f32.mrf.mxu0
  %v781 = vadd.f32 0.0, %v780
  %782 = vmatmul.f32.gmra.mxu0 %v755
  %v783 = vpop.f32.mrf.mxu0
  %v784 = vadd.f32 0.0, %v783
  %785 = vmatmul.f32.gmra.mxu0 %v758
  %v786 = vpop.f32.mrf.mxu0
  %v787 = vadd.f32 0.0, %v786
  %788 = vmatmul.f32.gmra.mxu0 %v761
  %v789 = vpop.f32.mrf.mxu0
  %v790 = vadd.f32 0.0, %v789
  %791 = vdwg.mxu0
  %792 = vmatpush.msra.mxu0 0.0
  %793 = vmatpush.msra.mxu0 0.0
  %794 = vmatpush.msra.mxu0 0.0
  %795 = vmatpush.msra.mxu0 0.0
  %796 = vmatpush.msra.mxu0 0.0
  %797 = vmatpush.msra.mxu0 0.0
  %798 = vmatpush.msra.mxu0 0.0
  %799 = vmatpush.msra.mxu0 0.0
  %800 = vmatpush.msra.mxu0 0.0
  %801 = vmatpush.msra.mxu0 0.0
  %802 = vmatpush.msra.mxu0 0.0
  %803 = vmatpush.msra.mxu0 0.0
  %804 = vmatpush.msra.mxu0 %v746
  %805 = vmatpush.msra.mxu0 %v744
  %806 = vmatpush.msra.mxu0 %v742
  %807 = vmatpush.msra.mxu0 %v740
  %808 = vmatmul.f32.gmra.mxu0 %v752
  %v809 = vpop.f32.mrf.mxu0
  %v810 = vadd.f32 0.0, %v809
  %811 = vmatmul.f32.gmra.mxu0 %v755
  %v812 = vpop.f32.mrf.mxu0
  %v813 = vadd.f32 0.0, %v812
  %814 = vmatmul.f32.gmra.mxu0 %v758
  %v815 = vpop.f32.mrf.mxu0
  %v816 = vadd.f32 0.0, %v815
  %817 = vmatmul.f32.gmra.mxu0 %v761
  %v818 = vpop.f32.mrf.mxu0
  %v819 = vadd.f32 0.0, %v818
  %820 = vdwg.mxu0
  %v821 = vadd.f32 %v699, %v781
  %v822 = vadd.f32 %v700, %v810
  %v823 = vadd.f32 %v701, %v784
  %v824 = vadd.f32 %v702, %v813
  %v825 = vadd.f32 %v703, %v787
  %v826 = vadd.f32 %v704, %v816
  %v827 = vadd.f32 %v705, %v790
  %v828 = vadd.f32 %v706, %v819
  %829 = vrot.lane.b32.xlu0 %v21, 112
  %v830 = vpop.permute.xlu0 %829
  %831 = vrot.lane.b32.xlu0 %v23, 112
  %v832 = vpop.permute.xlu0 %831
  %833 = vrot.lane.b32.xlu0 %v25, 112
  %v834 = vpop.permute.xlu0 %833
  %835 = vrot.lane.b32.xlu0 %v27, 112
  %v836 = vpop.permute.xlu0 %835
  %837 = vrot.lane.b32.xlu0 %v22, 112
  %v838 = vpop.permute.xlu0 %837
  %839 = vrot.lane.b32.xlu0 %v24, 112
  %v840 = vpop.permute.xlu0 %839
  %841 = vrot.lane.b32.xlu0 %v26, 112
  %v842 = vpop.permute.xlu0 %841
  %843 = vrot.lane.b32.xlu0 %v28, 112
  %v844 = vpop.permute.xlu0 %843
  %vm845 = vcmp.lt.s32.totalorder %v46, 112
  %v846 = vsel %vm845, %v830, %v838
  %v847 = vsel %vm845, %v832, %v840
  %v848 = vsel %vm845, %v834, %v842
  %v849 = vsel %vm845, %v836, %v844
  %v850 = vsel %vm845, %v838, %v830
  %v851 = vsel %vm845, %v840, %v832
  %v852 = vsel %vm845, %v842, %v834
  %v853 = vsel %vm845, %v844, %v836
  %s854 = scalar_lea.vmem %s2, 7
  %v855 = vld [vmem:[%s854] ss:$8 sm:$0x3]
  %v857 = vperm.slane %v855, 0
  %v858 = vperm.slane %v855, 1
  %v861 = vmul.f32 %v846, %v857
  %v862 = vmul.f32 %v850, %v858
  %v863 = vmul.f32 %v847, %v857
  %v864 = vmul.f32 %v851, %v858
  %v865 = vmul.f32 %v848, %v857
  %v866 = vmul.f32 %v852, %v858
  %v867 = vmul.f32 %v849, %v857
  %v868 = vmul.f32 %v853, %v858
  %v869 = vld [vmem:[%s1 + $0xe0] sm:$0xff]
  %v870 = vld [vmem:[%s1 + $0xe8] sm:$0xff]
  %v871 = vld [vmem:[%s1 + $0xf0] sm:$0xff]
  %v872 = vld [vmem:[%s1 + $0xf8] sm:$0xff]
  %v874 = vsel %vm118, %v869, 0
  %v877 = vsel %vm118, %v870, 0
  %v880 = vsel %vm118, %v871, 0
  %v883 = vsel %vm118, %v872, 0
  %885 = vmatpush.msra.mxu0 0.0
  %886 = vmatpush.msra.mxu0 0.0
  %887 = vmatpush.msra.mxu0 0.0
  %888 = vmatpush.msra.mxu0 0.0
  %889 = vmatpush.msra.mxu0 0.0
  %890 = vmatpush.msra.mxu0 0.0
  %891 = vmatpush.msra.mxu0 0.0
  %892 = vmatpush.msra.mxu0 0.0
  %893 = vmatpush.msra.mxu0 0.0
  %894 = vmatpush.msra.mxu0 0.0
  %895 = vmatpush.msra.mxu0 0.0
  %896 = vmatpush.msra.mxu0 0.0
  %897 = vmatpush.msra.mxu0 %v867
  %898 = vmatpush.msra.mxu0 %v865
  %899 = vmatpush.msra.mxu0 %v863
  %900 = vmatpush.msra.mxu0 %v861
  %901 = vmatmul.f32.gmra.mxu0 %v874
  %v902 = vpop.f32.mrf.mxu0
  %v903 = vadd.f32 0.0, %v902
  %904 = vmatmul.f32.gmra.mxu0 %v877
  %v905 = vpop.f32.mrf.mxu0
  %v906 = vadd.f32 0.0, %v905
  %907 = vmatmul.f32.gmra.mxu0 %v880
  %v908 = vpop.f32.mrf.mxu0
  %v909 = vadd.f32 0.0, %v908
  %910 = vmatmul.f32.gmra.mxu0 %v883
  %v911 = vpop.f32.mrf.mxu0
  %v912 = vadd.f32 0.0, %v911
  %913 = vdwg.mxu0
  %914 = vmatpush.msra.mxu0 0.0
  %915 = vmatpush.msra.mxu0 0.0
  %916 = vmatpush.msra.mxu0 0.0
  %917 = vmatpush.msra.mxu0 0.0
  %918 = vmatpush.msra.mxu0 0.0
  %919 = vmatpush.msra.mxu0 0.0
  %920 = vmatpush.msra.mxu0 0.0
  %921 = vmatpush.msra.mxu0 0.0
  %922 = vmatpush.msra.mxu0 0.0
  %923 = vmatpush.msra.mxu0 0.0
  %924 = vmatpush.msra.mxu0 0.0
  %925 = vmatpush.msra.mxu0 0.0
  %926 = vmatpush.msra.mxu0 %v868
  %927 = vmatpush.msra.mxu0 %v866
  %928 = vmatpush.msra.mxu0 %v864
  %929 = vmatpush.msra.mxu0 %v862
  %930 = vmatmul.f32.gmra.mxu0 %v874
  %v931 = vpop.f32.mrf.mxu0
  %v932 = vadd.f32 0.0, %v931
  %933 = vmatmul.f32.gmra.mxu0 %v877
  %v934 = vpop.f32.mrf.mxu0
  %v935 = vadd.f32 0.0, %v934
  %936 = vmatmul.f32.gmra.mxu0 %v880
  %v937 = vpop.f32.mrf.mxu0
  %v938 = vadd.f32 0.0, %v937
  %939 = vmatmul.f32.gmra.mxu0 %v883
  %v940 = vpop.f32.mrf.mxu0
  %v941 = vadd.f32 0.0, %v940
  %942 = vdwg.mxu0
  %v943 = vadd.f32 %v821, %v903
  %v944 = vadd.f32 %v822, %v932
  %v945 = vadd.f32 %v823, %v906
  %v946 = vadd.f32 %v824, %v935
  %v947 = vadd.f32 %v825, %v909
  %v948 = vadd.f32 %v826, %v938
  %v949 = vadd.f32 %v827, %v912
  %v950 = vadd.f32 %v828, %v941
  %951 = vrot.lane.b32.xlu0 %v21, 111
  %v952 = vpop.permute.xlu0 %951
  %953 = vrot.lane.b32.xlu0 %v23, 111
  %v954 = vpop.permute.xlu0 %953
  %955 = vrot.lane.b32.xlu0 %v25, 111
  %v956 = vpop.permute.xlu0 %955
  %957 = vrot.lane.b32.xlu0 %v27, 111
  %v958 = vpop.permute.xlu0 %957
  %959 = vrot.lane.b32.xlu0 %v22, 111
  %v960 = vpop.permute.xlu0 %959
  %961 = vrot.lane.b32.xlu0 %v24, 111
  %v962 = vpop.permute.xlu0 %961
  %963 = vrot.lane.b32.xlu0 %v26, 111
  %v964 = vpop.permute.xlu0 %963
  %965 = vrot.lane.b32.xlu0 %v28, 111
  %v966 = vpop.permute.xlu0 %965
  %vm967 = vcmp.lt.s32.totalorder %v46, 111
  %v968 = vsel %vm967, %v952, %v960
  %v969 = vsel %vm967, %v954, %v962
  %v970 = vsel %vm967, %v956, %v964
  %v971 = vsel %vm967, %v958, %v966
  %v972 = vsel %vm967, %v960, %v952
  %v973 = vsel %vm967, %v962, %v954
  %v974 = vsel %vm967, %v964, %v956
  %v975 = vsel %vm967, %v966, %v958
  %s976 = scalar_lea.vmem %s2, 16
  %v977 = vld [vmem:[%s976] ss:$8 sm:$0x3]
  %v979 = vperm.slane %v977, 0
  %v980 = vperm.slane %v977, 1
  %v983 = vmul.f32 %v968, %v979
  %v984 = vmul.f32 %v972, %v980
  %v985 = vmul.f32 %v969, %v979
  %v986 = vmul.f32 %v973, %v980
  %v987 = vmul.f32 %v970, %v979
  %v988 = vmul.f32 %v974, %v980
  %v989 = vmul.f32 %v971, %v979
  %v990 = vmul.f32 %v975, %v980
  %v991 = vld [vmem:[%s1 + $0x100] sm:$0xff]
  %v992 = vld [vmem:[%s1 + $0x108] sm:$0xff]
  %v993 = vld [vmem:[%s1 + $0x110] sm:$0xff]
  %v994 = vld [vmem:[%s1 + $0x118] sm:$0xff]
  %v996 = vsel %vm118, %v991, 0
  %v999 = vsel %vm118, %v992, 0
  %v1002 = vsel %vm118, %v993, 0
  %v1005 = vsel %vm118, %v994, 0
  %1007 = vmatpush.msra.mxu0 0.0
  %1008 = vmatpush.msra.mxu0 0.0
  %1009 = vmatpush.msra.mxu0 0.0
  %1010 = vmatpush.msra.mxu0 0.0
  %1011 = vmatpush.msra.mxu0 0.0
  %1012 = vmatpush.msra.mxu0 0.0
  %1013 = vmatpush.msra.mxu0 0.0
  %1014 = vmatpush.msra.mxu0 0.0
  %1015 = vmatpush.msra.mxu0 0.0
  %1016 = vmatpush.msra.mxu0 0.0
  %1017 = vmatpush.msra.mxu0 0.0
  %1018 = vmatpush.msra.mxu0 0.0
  %1019 = vmatpush.msra.mxu0 %v989
  %1020 = vmatpush.msra.mxu0 %v987
  %1021 = vmatpush.msra.mxu0 %v985
  %1022 = vmatpush.msra.mxu0 %v983
  %1023 = vmatmul.f32.gmra.mxu0 %v996
  %v1024 = vpop.f32.mrf.mxu0
  %v1025 = vadd.f32 0.0, %v1024
  %1026 = vmatmul.f32.gmra.mxu0 %v999
  %v1027 = vpop.f32.mrf.mxu0
  %v1028 = vadd.f32 0.0, %v1027
  %1029 = vmatmul.f32.gmra.mxu0 %v1002
  %v1030 = vpop.f32.mrf.mxu0
  %v1031 = vadd.f32 0.0, %v1030
  %1032 = vmatmul.f32.gmra.mxu0 %v1005
  %v1033 = vpop.f32.mrf.mxu0
  %v1034 = vadd.f32 0.0, %v1033
  %1035 = vdwg.mxu0
  %1036 = vmatpush.msra.mxu0 0.0
  %1037 = vmatpush.msra.mxu0 0.0
  %1038 = vmatpush.msra.mxu0 0.0
  %1039 = vmatpush.msra.mxu0 0.0
  %1040 = vmatpush.msra.mxu0 0.0
  %1041 = vmatpush.msra.mxu0 0.0
  %1042 = vmatpush.msra.mxu0 0.0
  %1043 = vmatpush.msra.mxu0 0.0
  %1044 = vmatpush.msra.mxu0 0.0
  %1045 = vmatpush.msra.mxu0 0.0
  %1046 = vmatpush.msra.mxu0 0.0
  %1047 = vmatpush.msra.mxu0 0.0
  %1048 = vmatpush.msra.mxu0 %v990
  %1049 = vmatpush.msra.mxu0 %v988
  %1050 = vmatpush.msra.mxu0 %v986
  %1051 = vmatpush.msra.mxu0 %v984
  %1052 = vmatmul.f32.gmra.mxu0 %v996
  %v1053 = vpop.f32.mrf.mxu0
  %v1054 = vadd.f32 0.0, %v1053
  %1055 = vmatmul.f32.gmra.mxu0 %v999
  %v1056 = vpop.f32.mrf.mxu0
  %v1057 = vadd.f32 0.0, %v1056
  %1058 = vmatmul.f32.gmra.mxu0 %v1002
  %v1059 = vpop.f32.mrf.mxu0
  %v1060 = vadd.f32 0.0, %v1059
  %1061 = vmatmul.f32.gmra.mxu0 %v1005
  %v1062 = vpop.f32.mrf.mxu0
  %v1063 = vadd.f32 0.0, %v1062
  %1064 = vdwg.mxu0
  %v1065 = vadd.f32 %v943, %v1025
  %v1066 = vadd.f32 %v944, %v1054
  %v1067 = vadd.f32 %v945, %v1028
  %v1068 = vadd.f32 %v946, %v1057
  %v1069 = vadd.f32 %v947, %v1031
  %v1070 = vadd.f32 %v948, %v1060
  %v1071 = vadd.f32 %v949, %v1034
  %v1072 = vadd.f32 %v950, %v1063
  %1074 = vset.pattern.permute.xlu0 0
  %1075 = vperm.xlu0 %1074, %v17
  %v1076 = vpop.permute.xlu0 %1075
  %1079 = vset.pattern.permute.xlu0 0
  %1080 = vperm.xlu0 %1079, %v18
  %v1081 = vpop.permute.xlu0 %1080
  %1084 = vset.pattern.permute.xlu0 0
  %1085 = vperm.xlu0 %1084, %v19
  %v1086 = vpop.permute.xlu0 %1085
  %1089 = vset.pattern.permute.xlu0 0
  %1090 = vperm.xlu0 %1089, %v20
  %v1091 = vpop.permute.xlu0 %1090
  %v1093 = vadd.f32 %v1065, %v1076
  %v1094 = vadd.f32 %v1066, %v1076
  %v1095 = vadd.f32 %v1067, %v1081
  %v1096 = vadd.f32 %v1068, %v1081
  %v1097 = vadd.f32 %v1069, %v1086
  %v1098 = vadd.f32 %v1070, %v1086
  %v1099 = vadd.f32 %v1071, %v1091
  %v1100 = vadd.f32 %v1072, %v1091
  %v1101 = vadd.f32 %v1093, %v1094
  %1102 = vadd.xlane.f32.xlu0 %v1101
  %v1103 = vpop.xlane.xlu0 %1102
  %v1104 = vadd.f32 %v1095, %v1096
  %1105 = vadd.xlane.f32.xlu0 %v1104
  %v1106 = vpop.xlane.xlu0 %1105
  %v1107 = vadd.f32 %v1097, %v1098
  %1108 = vadd.xlane.f32.xlu0 %v1107
  %v1109 = vpop.xlane.xlu0 %1108
  %v1110 = vadd.f32 %v1099, %v1100
  %1111 = vadd.xlane.f32.xlu0 %v1110
  %v1112 = vpop.xlane.xlu0 %1111
  %v1113 = vrcp.pop 256.0
  %v1114 = vmul.f32 256.0, %v1113
  %v1115 = vsub.f32 1.0, %v1114
  %v1116 = vmul.f32 %v1113, %v1115
  %v1117 = vadd.f32 %v1113, %v1116
  %vm1118 = vweird.f32 %v1113
  %v1119 = vsel %vm1118, %v1113, %v1117
  %v1120 = vmul.f32 %v1103, %v1119
  %v1121 = vmul.f32 %v1106, %v1119
  %v1122 = vmul.f32 %v1109, %v1119
  %v1123 = vmul.f32 %v1112, %v1119
  %v1124 = vld [vmem:[%s3] sm:$0x1]
  %v1125 = vmul.f32 %v17, %v1120
  %v1126 = vmul.f32 %v18, %v1121
  %v1127 = vmul.f32 %v19, %v1122
  %v1128 = vmul.f32 %v20, %v1123
  %vm1129 = vcmask 23568
  %v1130 = vsel %vm1129, %v1125, 0.0
  %v1131 = vsel %vm1129, %v1126, 0.0
  %v1132 = vadd.f32 %v1130, %v1131
  %v1133 = vsel %vm1129, %v1127, 0.0
  %v1134 = vadd.f32 %v1132, %v1133
  %v1135 = vsel %vm1129, %v1128, 0.0
  %v1136 = vadd.f32 %v1134, %v1135
  %v1137 = vrot.slane %v1136, 4
  %v1138 = vadd.f32 %v1136, %v1137
  %v1139 = vrot.slane %v1138, 2
  %v1140 = vadd.f32 %v1138, %v1139
  %v1141 = vrot.slane %v1140, 1
  %v1142 = vadd.f32 %v1140, %v1141
  %1144 = vrot.lane.b32.xlu0 %v1124, 124
  %v1145 = vpop.permute.xlu0 %1144
  %v1147 = vadd.f32 %v1142, %v1145
  %v1148 = vmax.f32 %v1147, 0.0
  %v1149 = vperm.slane %v1148, 0
  %1150 = vrot.lane.b32.xlu0 %v17, 126
  %v1151 = vpop.permute.xlu0 %1150
  %1152 = vrot.lane.b32.xlu0 %v18, 126
  %v1153 = vpop.permute.xlu0 %1152
  %1154 = vrot.lane.b32.xlu0 %v19, 126
  %v1155 = vpop.permute.xlu0 %1154
  %1156 = vrot.lane.b32.xlu0 %v20, 126
  %v1157 = vpop.permute.xlu0 %1156
  %v1162 = vmul.f32 %v1149, %v1151
  %v1163 = vmul.f32 %v1149, %v1153
  %v1164 = vmul.f32 %v1149, %v1155
  %v1165 = vmul.f32 %v1149, %v1157
  %1170 = vrot.lane.b32.xlu0 %v1162, 127
  %v1171 = vpop.permute.xlu0 %1170
  %1172 = vrot.lane.b32.xlu0 %v1163, 127
  %v1173 = vpop.permute.xlu0 %1172
  %1174 = vrot.lane.b32.xlu0 %v1164, 127
  %v1175 = vpop.permute.xlu0 %1174
  %1176 = vrot.lane.b32.xlu0 %v1165, 127
  %v1177 = vpop.permute.xlu0 %1176
  %v1182 = vadd.f32 %v17, %v1171
  %v1183 = vadd.f32 %v18, %v1173
  %v1184 = vadd.f32 %v19, %v1175
  %v1185 = vadd.f32 %v20, %v1177
  %v1186 = vld [vmem:[%s3 + $0x1] sm:$0x1]
  %vm1187 = vcmask 31768
  %v1188 = vsel %vm1187, %v1125, 0.0
  %v1189 = vsel %vm1187, %v1126, 0.0
  %v1190 = vadd.f32 %v1188, %v1189
  %v1191 = vsel %vm1187, %v1127, 0.0
  %v1192 = vadd.f32 %v1190, %v1191
  %v1193 = vsel %vm1187, %v1128, 0.0
  %v1194 = vadd.f32 %v1192, %v1193
  %v1195 = vrot.slane %v1194, 4
  %v1196 = vadd.f32 %v1194, %v1195
  %v1197 = vrot.slane %v1196, 2
  %v1198 = vadd.f32 %v1196, %v1197
  %v1199 = vrot.slane %v1198, 1
  %v1200 = vadd.f32 %v1198, %v1199
  %1202 = vrot.lane.b32.xlu0 %v1186, 125
  %v1203 = vpop.permute.xlu0 %1202
  %v1205 = vadd.f32 %v1200, %v1203
  %v1206 = vmax.f32 %v1205, 0.0
  %v1207 = vperm.slane %v1206, 0
  %v1208 = vmul.f32 %v1207, %v1151
  %v1209 = vmul.f32 %v1207, %v1153
  %v1210 = vmul.f32 %v1207, %v1155
  %v1211 = vmul.f32 %v1207, %v1157
  %1216 = vrot.lane.b32.xlu0 %v1208, 126
  %v1217 = vpop.permute.xlu0 %1216
  %1218 = vrot.lane.b32.xlu0 %v1209, 126
  %v1219 = vpop.permute.xlu0 %1218
  %1220 = vrot.lane.b32.xlu0 %v1210, 126
  %v1221 = vpop.permute.xlu0 %1220
  %1222 = vrot.lane.b32.xlu0 %v1211, 126
  %v1223 = vpop.permute.xlu0 %1222
  %v1228 = vadd.f32 %v1182, %v1217
  %v1229 = vadd.f32 %v1183, %v1219
  %v1230 = vadd.f32 %v1184, %v1221
  %v1231 = vadd.f32 %v1185, %v1223
  %v1232 = vxor.u32 %v1228, 2147483648
  %v1233 = vxor.u32 %v1229, 2147483648
  %v1234 = vxor.u32 %v1230, 2147483648
  %v1235 = vxor.u32 %v1231, 2147483648
  %v1236 = vmul.f32 %v1232, 1.442695
  %v1237 = vpow.pop %v1236
  %v1238 = vmul.f32 %v1233, 1.442695
  %v1239 = vpow.pop %v1238
  %v1240 = vmul.f32 %v1234, 1.442695
  %v1241 = vpow.pop %v1240
  %v1242 = vmul.f32 %v1235, 1.442695
  %v1243 = vpow.pop %v1242
  %v1244 = vadd.f32 %v1237, 1.0
  %v1245 = vadd.f32 %v1239, 1.0
  %v1246 = vadd.f32 %v1241, 1.0
  %v1247 = vadd.f32 %v1243, 1.0
  %v1248 = vrcp.pop %v1244
  %v1249 = vmul.f32 %v1244, %v1248
  %v1250 = vsub.f32 1.0, %v1249
  %v1251 = vmul.f32 %v1248, %v1250
  %v1252 = vadd.f32 %v1248, %v1251
  %vm1253 = vweird.f32 %v1244
  %vm1254 = vweird.f32 %v1248
  %vm1255 = vmor %vm1253, %vm1254
  %v1256 = vsel %vm1255, %v1248, %v1252
  %v1257 = vand.u32 2147483647, %v1244
  %vm1258 = vcmp.eq.f32.partialorder %v1257, 8.507059e+37
  %v1259 = vand.u32 %v1244, 2147483648
  %v1260 = vor.u32 1.1754944e-38, %v1259
  %v1261 = vsel %vm1258, %v1260, %v1256
  %v1262 = vmul.f32 1.0, %v1261
  %v1263 = vrcp.pop %v1245
  %v1264 = vmul.f32 %v1245, %v1263
  %v1265 = vsub.f32 1.0, %v1264
  %v1266 = vmul.f32 %v1263, %v1265
  %v1267 = vadd.f32 %v1263, %v1266
  %vm1268 = vweird.f32 %v1245
  %vm1269 = vweird.f32 %v1263
  %vm1270 = vmor %vm1268, %vm1269
  %v1271 = vsel %vm1270, %v1263, %v1267
  %v1272 = vand.u32 2147483647, %v1245
  %vm1273 = vcmp.eq.f32.partialorder %v1272, 8.507059e+37
  %v1274 = vand.u32 %v1245, 2147483648
  %v1275 = vor.u32 1.1754944e-38, %v1274
  %v1276 = vsel %vm1273, %v1275, %v1271
  %v1277 = vmul.f32 1.0, %v1276
  %v1278 = vrcp.pop %v1246
  %v1279 = vmul.f32 %v1246, %v1278
  %v1280 = vsub.f32 1.0, %v1279
  %v1281 = vmul.f32 %v1278, %v1280
  %v1282 = vadd.f32 %v1278, %v1281
  %vm1283 = vweird.f32 %v1246
  %vm1284 = vweird.f32 %v1278
  %vm1285 = vmor %vm1283, %vm1284
  %v1286 = vsel %vm1285, %v1278, %v1282
  %v1287 = vand.u32 2147483647, %v1246
  %vm1288 = vcmp.eq.f32.partialorder %v1287, 8.507059e+37
  %v1289 = vand.u32 %v1246, 2147483648
  %v1290 = vor.u32 1.1754944e-38, %v1289
  %v1291 = vsel %vm1288, %v1290, %v1286
  %v1292 = vmul.f32 1.0, %v1291
  %v1293 = vrcp.pop %v1247
  %v1294 = vmul.f32 %v1247, %v1293
  %v1295 = vsub.f32 1.0, %v1294
  %v1296 = vmul.f32 %v1293, %v1295
  %v1297 = vadd.f32 %v1293, %v1296
  %vm1298 = vweird.f32 %v1247
  %vm1299 = vweird.f32 %v1293
  %vm1300 = vmor %vm1298, %vm1299
  %v1301 = vsel %vm1300, %v1293, %v1297
  %v1302 = vand.u32 2147483647, %v1247
  %vm1303 = vcmp.eq.f32.partialorder %v1302, 8.507059e+37
  %v1304 = vand.u32 %v1247, 2147483648
  %v1305 = vor.u32 1.1754944e-38, %v1304
  %v1306 = vsel %vm1303, %v1305, %v1301
  %v1307 = vmul.f32 1.0, %v1306
  %1309 = vset.pattern.permute.xlu0 1
  %1310 = vperm.xlu0 %1309, %v1262
  %v1311 = vpop.permute.xlu0 %1310
  %1314 = vset.pattern.permute.xlu0 1
  %1315 = vperm.xlu0 %1314, %v1277
  %v1316 = vpop.permute.xlu0 %1315
  %1319 = vset.pattern.permute.xlu0 1
  %1320 = vperm.xlu0 %1319, %v1292
  %v1321 = vpop.permute.xlu0 %1320
  %1324 = vset.pattern.permute.xlu0 1
  %1325 = vperm.xlu0 %1324, %v1307
  %v1326 = vpop.permute.xlu0 %1325
  %v1328 = vmul.f32 %v1093, %v1311
  %v1329 = vmul.f32 %v1094, %v1311
  %v1330 = vmul.f32 %v1095, %v1316
  %v1331 = vmul.f32 %v1096, %v1316
  %v1332 = vmul.f32 %v1097, %v1321
  %v1333 = vmul.f32 %v1098, %v1321
  %v1334 = vmul.f32 %v1099, %v1326
  %v1335 = vmul.f32 %v1100, %v1326
  %v1336 = vmax.f32 %v1328, 0.0
  %v1337 = vmax.f32 %v1329, 0.0
  %v1338 = vmax.f32 %v1330, 0.0
  %v1339 = vmax.f32 %v1331, 0.0
  %v1340 = vmax.f32 %v1332, 0.0
  %v1341 = vmax.f32 %v1333, 0.0
  %v1342 = vmax.f32 %v1334, 0.0
  %v1343 = vmax.f32 %v1335, 0.0
  %1344 = vst [vmem:[%s4] sm:$0xff] %v1336
  %1345 = vst [vmem:[%s4 + $0x8] sm:$0xff] %v1337
  %1346 = vst [vmem:[%s4 + $0x10] sm:$0xff] %v1338
  %1347 = vst [vmem:[%s4 + $0x18] sm:$0xff] %v1339
  %1348 = vst [vmem:[%s4 + $0x20] sm:$0xff] %v1340
  %1349 = vst [vmem:[%s4 + $0x28] sm:$0xff] %v1341
  %1350 = vst [vmem:[%s4 + $0x30] sm:$0xff] %v1342
  %1351 = vst [vmem:[%s4 + $0x38] sm:$0xff] %v1343
  %s1352 = scalar_lea.vmem %s0, 64
  %v1353 = vld [vmem:[%s1352] sm:$0xff]
  %v1354 = vld [vmem:[%s1352 + $0x8] sm:$0xff]
  %v1355 = vld [vmem:[%s1352 + $0x10] sm:$0xff]
  %v1356 = vld [vmem:[%s1352 + $0x18] sm:$0xff]
  %v1357 = vld [vmem:[%s1352 + $0x20] sm:$0xff]
  %v1358 = vld [vmem:[%s1352 + $0x28] sm:$0xff]
  %v1359 = vld [vmem:[%s1352 + $0x30] sm:$0xff]
  %v1360 = vld [vmem:[%s1352 + $0x38] sm:$0xff]
  %1361 = vrot.lane.b32.xlu0 %v1353, 17
  %v1362 = vpop.permute.xlu0 %1361
  %1363 = vrot.lane.b32.xlu0 %v1355, 17
  %v1364 = vpop.permute.xlu0 %1363
  %1365 = vrot.lane.b32.xlu0 %v1357, 17
  %v1366 = vpop.permute.xlu0 %1365
  %1367 = vrot.lane.b32.xlu0 %v1359, 17
  %v1368 = vpop.permute.xlu0 %1367
  %1369 = vrot.lane.b32.xlu0 %v1354, 17
  %v1370 = vpop.permute.xlu0 %1369
  %1371 = vrot.lane.b32.xlu0 %v1356, 17
  %v1372 = vpop.permute.xlu0 %1371
  %1373 = vrot.lane.b32.xlu0 %v1358, 17
  %v1374 = vpop.permute.xlu0 %1373
  %1375 = vrot.lane.b32.xlu0 %v1360, 17
  %v1376 = vpop.permute.xlu0 %1375
  %v1377 = vsel %vm47, %v1362, %v1370
  %v1378 = vsel %vm47, %v1364, %v1372
  %v1379 = vsel %vm47, %v1366, %v1374
  %v1380 = vsel %vm47, %v1368, %v1376
  %v1381 = vsel %vm47, %v1370, %v1362
  %v1382 = vsel %vm47, %v1372, %v1364
  %v1383 = vsel %vm47, %v1374, %v1366
  %v1384 = vsel %vm47, %v1376, %v1368
  %v1385 = vld [vmem:[%s2] ss:$8 sm:$0x3]
  %v1387 = vperm.slane %v1385, 0
  %v1388 = vperm.slane %v1385, 1
  %v1391 = vmul.f32 %v1381, %v1387
  %v1392 = vmul.f32 %v1377, %v1388
  %v1393 = vmul.f32 %v1382, %v1387
  %v1394 = vmul.f32 %v1378, %v1388
  %v1395 = vmul.f32 %v1383, %v1387
  %v1396 = vmul.f32 %v1379, %v1388
  %v1397 = vmul.f32 %v1384, %v1387
  %v1398 = vmul.f32 %v1380, %v1388
  %v1399 = vld [vmem:[%s1] sm:$0xff]
  %v1400 = vld [vmem:[%s1 + $0x8] sm:$0xff]
  %v1401 = vld [vmem:[%s1 + $0x10] sm:$0xff]
  %v1402 = vld [vmem:[%s1 + $0x18] sm:$0xff]
  %1403 = vrot.lane.b32.xlu0 %v1353, 16
  %v1404 = vpop.permute.xlu0 %1403
  %1405 = vrot.lane.b32.xlu0 %v1355, 16
  %v1406 = vpop.permute.xlu0 %1405
  %1407 = vrot.lane.b32.xlu0 %v1357, 16
  %v1408 = vpop.permute.xlu0 %1407
  %1409 = vrot.lane.b32.xlu0 %v1359, 16
  %v1410 = vpop.permute.xlu0 %1409
  %1411 = vrot.lane.b32.xlu0 %v1354, 16
  %v1412 = vpop.permute.xlu0 %1411
  %1413 = vrot.lane.b32.xlu0 %v1356, 16
  %v1414 = vpop.permute.xlu0 %1413
  %1415 = vrot.lane.b32.xlu0 %v1358, 16
  %v1416 = vpop.permute.xlu0 %1415
  %1417 = vrot.lane.b32.xlu0 %v1360, 16
  %v1418 = vpop.permute.xlu0 %1417
  %v1419 = vsel %vm90, %v1404, %v1412
  %v1420 = vsel %vm90, %v1406, %v1414
  %v1421 = vsel %vm90, %v1408, %v1416
  %v1422 = vsel %vm90, %v1410, %v1418
  %v1423 = vsel %vm90, %v1412, %v1404
  %v1424 = vsel %vm90, %v1414, %v1406
  %v1425 = vsel %vm90, %v1416, %v1408
  %v1426 = vsel %vm90, %v1418, %v1410
  %v1427 = vld [vmem:[%s99] ss:$8 sm:$0x3]
  %v1429 = vperm.slane %v1427, 0
  %v1430 = vperm.slane %v1427, 1
  %v1433 = vmul.f32 %v1423, %v1429
  %v1434 = vmul.f32 %v1419, %v1430
  %v1435 = vmul.f32 %v1424, %v1429
  %v1436 = vmul.f32 %v1420, %v1430
  %v1437 = vmul.f32 %v1425, %v1429
  %v1438 = vmul.f32 %v1421, %v1430
  %v1439 = vmul.f32 %v1426, %v1429
  %v1440 = vmul.f32 %v1422, %v1430
  %v1441 = vld [vmem:[%s1 + $0x20] sm:$0xff]
  %v1442 = vld [vmem:[%s1 + $0x28] sm:$0xff]
  %v1443 = vld [vmem:[%s1 + $0x30] sm:$0xff]
  %v1444 = vld [vmem:[%s1 + $0x38] sm:$0xff]
  %v1446 = vsel %vm118, %v1441, 0
  %v1449 = vsel %vm118, %v1442, 0
  %v1452 = vsel %vm118, %v1443, 0
  %v1455 = vsel %vm118, %v1444, 0
  %1457 = vmatpush.msra.mxu0 0.0
  %1458 = vmatpush.msra.mxu0 0.0
  %1459 = vmatpush.msra.mxu0 0.0
  %1460 = vmatpush.msra.mxu0 0.0
  %1461 = vmatpush.msra.mxu0 0.0
  %1462 = vmatpush.msra.mxu0 0.0
  %1463 = vmatpush.msra.mxu0 0.0
  %1464 = vmatpush.msra.mxu0 0.0
  %1465 = vmatpush.msra.mxu0 0.0
  %1466 = vmatpush.msra.mxu0 0.0
  %1467 = vmatpush.msra.mxu0 0.0
  %1468 = vmatpush.msra.mxu0 0.0
  %1469 = vmatpush.msra.mxu0 %v1439
  %1470 = vmatpush.msra.mxu0 %v1437
  %1471 = vmatpush.msra.mxu0 %v1435
  %1472 = vmatpush.msra.mxu0 %v1433
  %1473 = vmatmul.f32.gmra.mxu0 %v1446
  %v1474 = vpop.f32.mrf.mxu0
  %v1475 = vadd.f32 0.0, %v1474
  %1476 = vmatmul.f32.gmra.mxu0 %v1449
  %v1477 = vpop.f32.mrf.mxu0
  %v1478 = vadd.f32 0.0, %v1477
  %1479 = vmatmul.f32.gmra.mxu0 %v1452
  %v1480 = vpop.f32.mrf.mxu0
  %v1481 = vadd.f32 0.0, %v1480
  %1482 = vmatmul.f32.gmra.mxu0 %v1455
  %v1483 = vpop.f32.mrf.mxu0
  %v1484 = vadd.f32 0.0, %v1483
  %1485 = vdwg.mxu0
  %1486 = vmatpush.msra.mxu0 0.0
  %1487 = vmatpush.msra.mxu0 0.0
  %1488 = vmatpush.msra.mxu0 0.0
  %1489 = vmatpush.msra.mxu0 0.0
  %1490 = vmatpush.msra.mxu0 0.0
  %1491 = vmatpush.msra.mxu0 0.0
  %1492 = vmatpush.msra.mxu0 0.0
  %1493 = vmatpush.msra.mxu0 0.0
  %1494 = vmatpush.msra.mxu0 0.0
  %1495 = vmatpush.msra.mxu0 0.0
  %1496 = vmatpush.msra.mxu0 0.0
  %1497 = vmatpush.msra.mxu0 0.0
  %1498 = vmatpush.msra.mxu0 %v1440
  %1499 = vmatpush.msra.mxu0 %v1438
  %1500 = vmatpush.msra.mxu0 %v1436
  %1501 = vmatpush.msra.mxu0 %v1434
  %1502 = vmatmul.f32.gmra.mxu0 %v1446
  %v1503 = vpop.f32.mrf.mxu0
  %v1504 = vadd.f32 0.0, %v1503
  %1505 = vmatmul.f32.gmra.mxu0 %v1449
  %v1506 = vpop.f32.mrf.mxu0
  %v1507 = vadd.f32 0.0, %v1506
  %1508 = vmatmul.f32.gmra.mxu0 %v1452
  %v1509 = vpop.f32.mrf.mxu0
  %v1510 = vadd.f32 0.0, %v1509
  %1511 = vmatmul.f32.gmra.mxu0 %v1455
  %v1512 = vpop.f32.mrf.mxu0
  %v1513 = vadd.f32 0.0, %v1512
  %1514 = vdwg.mxu0
  %v1516 = vsel %vm118, %v1399, 0
  %v1519 = vsel %vm118, %v1400, 0
  %v1522 = vsel %vm118, %v1401, 0
  %v1525 = vsel %vm118, %v1402, 0
  %1527 = vmatpush.msra.mxu0 0.0
  %1528 = vmatpush.msra.mxu0 0.0
  %1529 = vmatpush.msra.mxu0 0.0
  %1530 = vmatpush.msra.mxu0 0.0
  %1531 = vmatpush.msra.mxu0 0.0
  %1532 = vmatpush.msra.mxu0 0.0
  %1533 = vmatpush.msra.mxu0 0.0
  %1534 = vmatpush.msra.mxu0 0.0
  %1535 = vmatpush.msra.mxu0 0.0
  %1536 = vmatpush.msra.mxu0 0.0
  %1537 = vmatpush.msra.mxu0 0.0
  %1538 = vmatpush.msra.mxu0 0.0
  %1539 = vmatpush.msra.mxu0 %v1397
  %1540 = vmatpush.msra.mxu0 %v1395
  %1541 = vmatpush.msra.mxu0 %v1393
  %1542 = vmatpush.msra.mxu0 %v1391
  %1543 = vmatmul.f32.gmra.mxu0 %v1516
  %v1544 = vpop.f32.mrf.mxu0
  %v1545 = vadd.f32 %v1475, %v1544
  %1546 = vmatmul.f32.gmra.mxu0 %v1519
  %v1547 = vpop.f32.mrf.mxu0
  %v1548 = vadd.f32 %v1478, %v1547
  %1549 = vmatmul.f32.gmra.mxu0 %v1522
  %v1550 = vpop.f32.mrf.mxu0
  %v1551 = vadd.f32 %v1481, %v1550
  %1552 = vmatmul.f32.gmra.mxu0 %v1525
  %v1553 = vpop.f32.mrf.mxu0
  %v1554 = vadd.f32 %v1484, %v1553
  %1555 = vdwg.mxu0
  %1556 = vmatpush.msra.mxu0 0.0
  %1557 = vmatpush.msra.mxu0 0.0
  %1558 = vmatpush.msra.mxu0 0.0
  %1559 = vmatpush.msra.mxu0 0.0
  %1560 = vmatpush.msra.mxu0 0.0
  %1561 = vmatpush.msra.mxu0 0.0
  %1562 = vmatpush.msra.mxu0 0.0
  %1563 = vmatpush.msra.mxu0 0.0
  %1564 = vmatpush.msra.mxu0 0.0
  %1565 = vmatpush.msra.mxu0 0.0
  %1566 = vmatpush.msra.mxu0 0.0
  %1567 = vmatpush.msra.mxu0 0.0
  %1568 = vmatpush.msra.mxu0 %v1398
  %1569 = vmatpush.msra.mxu0 %v1396
  %1570 = vmatpush.msra.mxu0 %v1394
  %1571 = vmatpush.msra.mxu0 %v1392
  %1572 = vmatmul.f32.gmra.mxu0 %v1516
  %v1573 = vpop.f32.mrf.mxu0
  %v1574 = vadd.f32 %v1504, %v1573
  %1575 = vmatmul.f32.gmra.mxu0 %v1519
  %v1576 = vpop.f32.mrf.mxu0
  %v1577 = vadd.f32 %v1507, %v1576
  %1578 = vmatmul.f32.gmra.mxu0 %v1522
  %v1579 = vpop.f32.mrf.mxu0
  %v1580 = vadd.f32 %v1510, %v1579
  %1581 = vmatmul.f32.gmra.mxu0 %v1525
  %v1582 = vpop.f32.mrf.mxu0
  %v1583 = vadd.f32 %v1513, %v1582
  %1584 = vdwg.mxu0
  %1585 = vrot.lane.b32.xlu0 %v1353, 15
  %v1586 = vpop.permute.xlu0 %1585
  %1587 = vrot.lane.b32.xlu0 %v1355, 15
  %v1588 = vpop.permute.xlu0 %1587
  %1589 = vrot.lane.b32.xlu0 %v1357, 15
  %v1590 = vpop.permute.xlu0 %1589
  %1591 = vrot.lane.b32.xlu0 %v1359, 15
  %v1592 = vpop.permute.xlu0 %1591
  %1593 = vrot.lane.b32.xlu0 %v1354, 15
  %v1594 = vpop.permute.xlu0 %1593
  %1595 = vrot.lane.b32.xlu0 %v1356, 15
  %v1596 = vpop.permute.xlu0 %1595
  %1597 = vrot.lane.b32.xlu0 %v1358, 15
  %v1598 = vpop.permute.xlu0 %1597
  %1599 = vrot.lane.b32.xlu0 %v1360, 15
  %v1600 = vpop.permute.xlu0 %1599
  %v1601 = vsel %vm275, %v1586, %v1594
  %v1602 = vsel %vm275, %v1588, %v1596
  %v1603 = vsel %vm275, %v1590, %v1598
  %v1604 = vsel %vm275, %v1592, %v1600
  %v1605 = vsel %vm275, %v1594, %v1586
  %v1606 = vsel %vm275, %v1596, %v1588
  %v1607 = vsel %vm275, %v1598, %v1590
  %v1608 = vsel %vm275, %v1600, %v1592
  %v1609 = vld [vmem:[%s284] ss:$8 sm:$0x3]
  %v1611 = vperm.slane %v1609, 0
  %v1612 = vperm.slane %v1609, 1
  %v1615 = vmul.f32 %v1605, %v1611
  %v1616 = vmul.f32 %v1601, %v1612
  %v1617 = vmul.f32 %v1606, %v1611
  %v1618 = vmul.f32 %v1602, %v1612
  %v1619 = vmul.f32 %v1607, %v1611
  %v1620 = vmul.f32 %v1603, %v1612
  %v1621 = vmul.f32 %v1608, %v1611
  %v1622 = vmul.f32 %v1604, %v1612
  %v1623 = vld [vmem:[%s1 + $0x40] sm:$0xff]
  %v1624 = vld [vmem:[%s1 + $0x48] sm:$0xff]
  %v1625 = vld [vmem:[%s1 + $0x50] sm:$0xff]
  %v1626 = vld [vmem:[%s1 + $0x58] sm:$0xff]
  %v1628 = vsel %vm118, %v1623, 0
  %v1631 = vsel %vm118, %v1624, 0
  %v1634 = vsel %vm118, %v1625, 0
  %v1637 = vsel %vm118, %v1626, 0
  %1639 = vmatpush.msra.mxu0 0.0
  %1640 = vmatpush.msra.mxu0 0.0
  %1641 = vmatpush.msra.mxu0 0.0
  %1642 = vmatpush.msra.mxu0 0.0
  %1643 = vmatpush.msra.mxu0 0.0
  %1644 = vmatpush.msra.mxu0 0.0
  %1645 = vmatpush.msra.mxu0 0.0
  %1646 = vmatpush.msra.mxu0 0.0
  %1647 = vmatpush.msra.mxu0 0.0
  %1648 = vmatpush.msra.mxu0 0.0
  %1649 = vmatpush.msra.mxu0 0.0
  %1650 = vmatpush.msra.mxu0 0.0
  %1651 = vmatpush.msra.mxu0 %v1621
  %1652 = vmatpush.msra.mxu0 %v1619
  %1653 = vmatpush.msra.mxu0 %v1617
  %1654 = vmatpush.msra.mxu0 %v1615
  %1655 = vmatmul.f32.gmra.mxu0 %v1628
  %v1656 = vpop.f32.mrf.mxu0
  %v1657 = vadd.f32 0.0, %v1656
  %1658 = vmatmul.f32.gmra.mxu0 %v1631
  %v1659 = vpop.f32.mrf.mxu0
  %v1660 = vadd.f32 0.0, %v1659
  %1661 = vmatmul.f32.gmra.mxu0 %v1634
  %v1662 = vpop.f32.mrf.mxu0
  %v1663 = vadd.f32 0.0, %v1662
  %1664 = vmatmul.f32.gmra.mxu0 %v1637
  %v1665 = vpop.f32.mrf.mxu0
  %v1666 = vadd.f32 0.0, %v1665
  %1667 = vdwg.mxu0
  %1668 = vmatpush.msra.mxu0 0.0
  %1669 = vmatpush.msra.mxu0 0.0
  %1670 = vmatpush.msra.mxu0 0.0
  %1671 = vmatpush.msra.mxu0 0.0
  %1672 = vmatpush.msra.mxu0 0.0
  %1673 = vmatpush.msra.mxu0 0.0
  %1674 = vmatpush.msra.mxu0 0.0
  %1675 = vmatpush.msra.mxu0 0.0
  %1676 = vmatpush.msra.mxu0 0.0
  %1677 = vmatpush.msra.mxu0 0.0
  %1678 = vmatpush.msra.mxu0 0.0
  %1679 = vmatpush.msra.mxu0 0.0
  %1680 = vmatpush.msra.mxu0 %v1622
  %1681 = vmatpush.msra.mxu0 %v1620
  %1682 = vmatpush.msra.mxu0 %v1618
  %1683 = vmatpush.msra.mxu0 %v1616
  %1684 = vmatmul.f32.gmra.mxu0 %v1628
  %v1685 = vpop.f32.mrf.mxu0
  %v1686 = vadd.f32 0.0, %v1685
  %1687 = vmatmul.f32.gmra.mxu0 %v1631
  %v1688 = vpop.f32.mrf.mxu0
  %v1689 = vadd.f32 0.0, %v1688
  %1690 = vmatmul.f32.gmra.mxu0 %v1634
  %v1691 = vpop.f32.mrf.mxu0
  %v1692 = vadd.f32 0.0, %v1691
  %1693 = vmatmul.f32.gmra.mxu0 %v1637
  %v1694 = vpop.f32.mrf.mxu0
  %v1695 = vadd.f32 0.0, %v1694
  %1696 = vdwg.mxu0
  %v1697 = vadd.f32 %v1545, %v1657
  %v1698 = vadd.f32 %v1574, %v1686
  %v1699 = vadd.f32 %v1548, %v1660
  %v1700 = vadd.f32 %v1577, %v1689
  %v1701 = vadd.f32 %v1551, %v1663
  %v1702 = vadd.f32 %v1580, %v1692
  %v1703 = vadd.f32 %v1554, %v1666
  %v1704 = vadd.f32 %v1583, %v1695
  %1705 = vrot.lane.b32.xlu0 %v1353, 1
  %v1706 = vpop.permute.xlu0 %1705
  %1707 = vrot.lane.b32.xlu0 %v1355, 1
  %v1708 = vpop.permute.xlu0 %1707
  %1709 = vrot.lane.b32.xlu0 %v1357, 1
  %v1710 = vpop.permute.xlu0 %1709
  %1711 = vrot.lane.b32.xlu0 %v1359, 1
  %v1712 = vpop.permute.xlu0 %1711
  %1713 = vrot.lane.b32.xlu0 %v1354, 1
  %v1714 = vpop.permute.xlu0 %1713
  %1715 = vrot.lane.b32.xlu0 %v1356, 1
  %v1716 = vpop.permute.xlu0 %1715
  %1717 = vrot.lane.b32.xlu0 %v1358, 1
  %v1718 = vpop.permute.xlu0 %1717
  %1719 = vrot.lane.b32.xlu0 %v1360, 1
  %v1720 = vpop.permute.xlu0 %1719
  %v1721 = vsel %vm397, %v1706, %v1714
  %v1722 = vsel %vm397, %v1708, %v1716
  %v1723 = vsel %vm397, %v1710, %v1718
  %v1724 = vsel %vm397, %v1712, %v1720
  %v1725 = vsel %vm397, %v1714, %v1706
  %v1726 = vsel %vm397, %v1716, %v1708
  %v1727 = vsel %vm397, %v1718, %v1710
  %v1728 = vsel %vm397, %v1720, %v1712
  %v1729 = vld [vmem:[%s406] ss:$8 sm:$0x3]
  %v1731 = vperm.slane %v1729, 0
  %v1732 = vperm.slane %v1729, 1
  %v1735 = vmul.f32 %v1725, %v1731
  %v1736 = vmul.f32 %v1721, %v1732
  %v1737 = vmul.f32 %v1726, %v1731
  %v1738 = vmul.f32 %v1722, %v1732
  %v1739 = vmul.f32 %v1727, %v1731
  %v1740 = vmul.f32 %v1723, %v1732
  %v1741 = vmul.f32 %v1728, %v1731
  %v1742 = vmul.f32 %v1724, %v1732
  %v1743 = vld [vmem:[%s1 + $0x60] sm:$0xff]
  %v1744 = vld [vmem:[%s1 + $0x68] sm:$0xff]
  %v1745 = vld [vmem:[%s1 + $0x70] sm:$0xff]
  %v1746 = vld [vmem:[%s1 + $0x78] sm:$0xff]
  %v1748 = vsel %vm118, %v1743, 0
  %v1751 = vsel %vm118, %v1744, 0
  %v1754 = vsel %vm118, %v1745, 0
  %v1757 = vsel %vm118, %v1746, 0
  %1759 = vmatpush.msra.mxu0 0.0
  %1760 = vmatpush.msra.mxu0 0.0
  %1761 = vmatpush.msra.mxu0 0.0
  %1762 = vmatpush.msra.mxu0 0.0
  %1763 = vmatpush.msra.mxu0 0.0
  %1764 = vmatpush.msra.mxu0 0.0
  %1765 = vmatpush.msra.mxu0 0.0
  %1766 = vmatpush.msra.mxu0 0.0
  %1767 = vmatpush.msra.mxu0 0.0
  %1768 = vmatpush.msra.mxu0 0.0
  %1769 = vmatpush.msra.mxu0 0.0
  %1770 = vmatpush.msra.mxu0 0.0
  %1771 = vmatpush.msra.mxu0 %v1741
  %1772 = vmatpush.msra.mxu0 %v1739
  %1773 = vmatpush.msra.mxu0 %v1737
  %1774 = vmatpush.msra.mxu0 %v1735
  %1775 = vmatmul.f32.gmra.mxu0 %v1748
  %v1776 = vpop.f32.mrf.mxu0
  %v1777 = vadd.f32 0.0, %v1776
  %1778 = vmatmul.f32.gmra.mxu0 %v1751
  %v1779 = vpop.f32.mrf.mxu0
  %v1780 = vadd.f32 0.0, %v1779
  %1781 = vmatmul.f32.gmra.mxu0 %v1754
  %v1782 = vpop.f32.mrf.mxu0
  %v1783 = vadd.f32 0.0, %v1782
  %1784 = vmatmul.f32.gmra.mxu0 %v1757
  %v1785 = vpop.f32.mrf.mxu0
  %v1786 = vadd.f32 0.0, %v1785
  %1787 = vdwg.mxu0
  %1788 = vmatpush.msra.mxu0 0.0
  %1789 = vmatpush.msra.mxu0 0.0
  %1790 = vmatpush.msra.mxu0 0.0
  %1791 = vmatpush.msra.mxu0 0.0
  %1792 = vmatpush.msra.mxu0 0.0
  %1793 = vmatpush.msra.mxu0 0.0
  %1794 = vmatpush.msra.mxu0 0.0
  %1795 = vmatpush.msra.mxu0 0.0
  %1796 = vmatpush.msra.mxu0 0.0
  %1797 = vmatpush.msra.mxu0 0.0
  %1798 = vmatpush.msra.mxu0 0.0
  %1799 = vmatpush.msra.mxu0 0.0
  %1800 = vmatpush.msra.mxu0 %v1742
  %1801 = vmatpush.msra.mxu0 %v1740
  %1802 = vmatpush.msra.mxu0 %v1738
  %1803 = vmatpush.msra.mxu0 %v1736
  %1804 = vmatmul.f32.gmra.mxu0 %v1748
  %v1805 = vpop.f32.mrf.mxu0
  %v1806 = vadd.f32 0.0, %v1805
  %1807 = vmatmul.f32.gmra.mxu0 %v1751
  %v1808 = vpop.f32.mrf.mxu0
  %v1809 = vadd.f32 0.0, %v1808
  %1810 = vmatmul.f32.gmra.mxu0 %v1754
  %v1811 = vpop.f32.mrf.mxu0
  %v1812 = vadd.f32 0.0, %v1811
  %1813 = vmatmul.f32.gmra.mxu0 %v1757
  %v1814 = vpop.f32.mrf.mxu0
  %v1815 = vadd.f32 0.0, %v1814
  %1816 = vdwg.mxu0
  %v1817 = vadd.f32 %v1697, %v1777
  %v1818 = vadd.f32 %v1698, %v1806
  %v1819 = vadd.f32 %v1699, %v1780
  %v1820 = vadd.f32 %v1700, %v1809
  %v1821 = vadd.f32 %v1701, %v1783
  %v1822 = vadd.f32 %v1702, %v1812
  %v1823 = vadd.f32 %v1703, %v1786
  %v1824 = vadd.f32 %v1704, %v1815
  %v1825 = vld [vmem:[%s1 + $0x80] sm:$0xff]
  %v1826 = vld [vmem:[%s1 + $0x88] sm:$0xff]
  %v1827 = vld [vmem:[%s1 + $0x90] sm:$0xff]
  %v1828 = vld [vmem:[%s1 + $0x98] sm:$0xff]
  %v1830 = vsel %vm118, %v1825, 0
  %v1833 = vsel %vm118, %v1826, 0
  %v1836 = vsel %vm118, %v1827, 0
  %v1839 = vsel %vm118, %v1828, 0
  %1841 = vmatpush.msra.mxu0 0.0
  %1842 = vmatpush.msra.mxu0 0.0
  %1843 = vmatpush.msra.mxu0 0.0
  %1844 = vmatpush.msra.mxu0 0.0
  %1845 = vmatpush.msra.mxu0 0.0
  %1846 = vmatpush.msra.mxu0 0.0
  %1847 = vmatpush.msra.mxu0 0.0
  %1848 = vmatpush.msra.mxu0 0.0
  %1849 = vmatpush.msra.mxu0 0.0
  %1850 = vmatpush.msra.mxu0 0.0
  %1851 = vmatpush.msra.mxu0 0.0
  %1852 = vmatpush.msra.mxu0 0.0
  %1853 = vmatpush.msra.mxu0 %v1359
  %1854 = vmatpush.msra.mxu0 %v1357
  %1855 = vmatpush.msra.mxu0 %v1355
  %1856 = vmatpush.msra.mxu0 %v1353
  %1857 = vmatmul.f32.gmra.mxu0 %v1830
  %v1858 = vpop.f32.mrf.mxu0
  %v1859 = vadd.f32 0.0, %v1858
  %1860 = vmatmul.f32.gmra.mxu0 %v1833
  %v1861 = vpop.f32.mrf.mxu0
  %v1862 = vadd.f32 0.0, %v1861
  %1863 = vmatmul.f32.gmra.mxu0 %v1836
  %v1864 = vpop.f32.mrf.mxu0
  %v1865 = vadd.f32 0.0, %v1864
  %1866 = vmatmul.f32.gmra.mxu0 %v1839
  %v1867 = vpop.f32.mrf.mxu0
  %v1868 = vadd.f32 0.0, %v1867
  %1869 = vdwg.mxu0
  %1870 = vmatpush.msra.mxu0 0.0
  %1871 = vmatpush.msra.mxu0 0.0
  %1872 = vmatpush.msra.mxu0 0.0
  %1873 = vmatpush.msra.mxu0 0.0
  %1874 = vmatpush.msra.mxu0 0.0
  %1875 = vmatpush.msra.mxu0 0.0
  %1876 = vmatpush.msra.mxu0 0.0
  %1877 = vmatpush.msra.mxu0 0.0
  %1878 = vmatpush.msra.mxu0 0.0
  %1879 = vmatpush.msra.mxu0 0.0
  %1880 = vmatpush.msra.mxu0 0.0
  %1881 = vmatpush.msra.mxu0 0.0
  %1882 = vmatpush.msra.mxu0 %v1360
  %1883 = vmatpush.msra.mxu0 %v1358
  %1884 = vmatpush.msra.mxu0 %v1356
  %1885 = vmatpush.msra.mxu0 %v1354
  %1886 = vmatmul.f32.gmra.mxu0 %v1830
  %v1887 = vpop.f32.mrf.mxu0
  %v1888 = vadd.f32 0.0, %v1887
  %1889 = vmatmul.f32.gmra.mxu0 %v1833
  %v1890 = vpop.f32.mrf.mxu0
  %v1891 = vadd.f32 0.0, %v1890
  %1892 = vmatmul.f32.gmra.mxu0 %v1836
  %v1893 = vpop.f32.mrf.mxu0
  %v1894 = vadd.f32 0.0, %v1893
  %1895 = vmatmul.f32.gmra.mxu0 %v1839
  %v1896 = vpop.f32.mrf.mxu0
  %v1897 = vadd.f32 0.0, %v1896
  %1898 = vdwg.mxu0
  %v1899 = vadd.f32 %v1817, %v1859
  %v1900 = vadd.f32 %v1818, %v1888
  %v1901 = vadd.f32 %v1819, %v1862
  %v1902 = vadd.f32 %v1820, %v1891
  %v1903 = vadd.f32 %v1821, %v1865
  %v1904 = vadd.f32 %v1822, %v1894
  %v1905 = vadd.f32 %v1823, %v1868
  %v1906 = vadd.f32 %v1824, %v1897
  %1907 = vrot.lane.b32.xlu0 %v1353, 127
  %v1908 = vpop.permute.xlu0 %1907
  %1909 = vrot.lane.b32.xlu0 %v1355, 127
  %v1910 = vpop.permute.xlu0 %1909
  %1911 = vrot.lane.b32.xlu0 %v1357, 127
  %v1912 = vpop.permute.xlu0 %1911
  %1913 = vrot.lane.b32.xlu0 %v1359, 127
  %v1914 = vpop.permute.xlu0 %1913
  %1915 = vrot.lane.b32.xlu0 %v1354, 127
  %v1916 = vpop.permute.xlu0 %1915
  %1917 = vrot.lane.b32.xlu0 %v1356, 127
  %v1918 = vpop.permute.xlu0 %1917
  %1919 = vrot.lane.b32.xlu0 %v1358, 127
  %v1920 = vpop.permute.xlu0 %1919
  %1921 = vrot.lane.b32.xlu0 %v1360, 127
  %v1922 = vpop.permute.xlu0 %1921
  %v1923 = vsel %vm601, %v1908, %v1916
  %v1924 = vsel %vm601, %v1910, %v1918
  %v1925 = vsel %vm601, %v1912, %v1920
  %v1926 = vsel %vm601, %v1914, %v1922
  %v1927 = vsel %vm601, %v1916, %v1908
  %v1928 = vsel %vm601, %v1918, %v1910
  %v1929 = vsel %vm601, %v1920, %v1912
  %v1930 = vsel %vm601, %v1922, %v1914
  %v1931 = vld [vmem:[%s610] ss:$8 sm:$0x3]
  %v1933 = vperm.slane %v1931, 0
  %v1934 = vperm.slane %v1931, 1
  %v1937 = vmul.f32 %v1923, %v1933
  %v1938 = vmul.f32 %v1927, %v1934
  %v1939 = vmul.f32 %v1924, %v1933
  %v1940 = vmul.f32 %v1928, %v1934
  %v1941 = vmul.f32 %v1925, %v1933
  %v1942 = vmul.f32 %v1929, %v1934
  %v1943 = vmul.f32 %v1926, %v1933
  %v1944 = vmul.f32 %v1930, %v1934
  %v1945 = vld [vmem:[%s1 + $0xa0] sm:$0xff]
  %v1946 = vld [vmem:[%s1 + $0xa8] sm:$0xff]
  %v1947 = vld [vmem:[%s1 + $0xb0] sm:$0xff]
  %v1948 = vld [vmem:[%s1 + $0xb8] sm:$0xff]
  %v1950 = vsel %vm118, %v1945, 0
  %v1953 = vsel %vm118, %v1946, 0
  %v1956 = vsel %vm118, %v1947, 0
  %v1959 = vsel %vm118, %v1948, 0
  %1961 = vmatpush.msra.mxu0 0.0
  %1962 = vmatpush.msra.mxu0 0.0
  %1963 = vmatpush.msra.mxu0 0.0
  %1964 = vmatpush.msra.mxu0 0.0
  %1965 = vmatpush.msra.mxu0 0.0
  %1966 = vmatpush.msra.mxu0 0.0
  %1967 = vmatpush.msra.mxu0 0.0
  %1968 = vmatpush.msra.mxu0 0.0
  %1969 = vmatpush.msra.mxu0 0.0
  %1970 = vmatpush.msra.mxu0 0.0
  %1971 = vmatpush.msra.mxu0 0.0
  %1972 = vmatpush.msra.mxu0 0.0
  %1973 = vmatpush.msra.mxu0 %v1943
  %1974 = vmatpush.msra.mxu0 %v1941
  %1975 = vmatpush.msra.mxu0 %v1939
  %1976 = vmatpush.msra.mxu0 %v1937
  %1977 = vmatmul.f32.gmra.mxu0 %v1950
  %v1978 = vpop.f32.mrf.mxu0
  %v1979 = vadd.f32 0.0, %v1978
  %1980 = vmatmul.f32.gmra.mxu0 %v1953
  %v1981 = vpop.f32.mrf.mxu0
  %v1982 = vadd.f32 0.0, %v1981
  %1983 = vmatmul.f32.gmra.mxu0 %v1956
  %v1984 = vpop.f32.mrf.mxu0
  %v1985 = vadd.f32 0.0, %v1984
  %1986 = vmatmul.f32.gmra.mxu0 %v1959
  %v1987 = vpop.f32.mrf.mxu0
  %v1988 = vadd.f32 0.0, %v1987
  %1989 = vdwg.mxu0
  %1990 = vmatpush.msra.mxu0 0.0
  %1991 = vmatpush.msra.mxu0 0.0
  %1992 = vmatpush.msra.mxu0 0.0
  %1993 = vmatpush.msra.mxu0 0.0
  %1994 = vmatpush.msra.mxu0 0.0
  %1995 = vmatpush.msra.mxu0 0.0
  %1996 = vmatpush.msra.mxu0 0.0
  %1997 = vmatpush.msra.mxu0 0.0
  %1998 = vmatpush.msra.mxu0 0.0
  %1999 = vmatpush.msra.mxu0 0.0
  %2000 = vmatpush.msra.mxu0 0.0
  %2001 = vmatpush.msra.mxu0 0.0
  %2002 = vmatpush.msra.mxu0 %v1944
  %2003 = vmatpush.msra.mxu0 %v1942
  %2004 = vmatpush.msra.mxu0 %v1940
  %2005 = vmatpush.msra.mxu0 %v1938
  %2006 = vmatmul.f32.gmra.mxu0 %v1950
  %v2007 = vpop.f32.mrf.mxu0
  %v2008 = vadd.f32 0.0, %v2007
  %2009 = vmatmul.f32.gmra.mxu0 %v1953
  %v2010 = vpop.f32.mrf.mxu0
  %v2011 = vadd.f32 0.0, %v2010
  %2012 = vmatmul.f32.gmra.mxu0 %v1956
  %v2013 = vpop.f32.mrf.mxu0
  %v2014 = vadd.f32 0.0, %v2013
  %2015 = vmatmul.f32.gmra.mxu0 %v1959
  %v2016 = vpop.f32.mrf.mxu0
  %v2017 = vadd.f32 0.0, %v2016
  %2018 = vdwg.mxu0
  %v2019 = vadd.f32 %v1899, %v1979
  %v2020 = vadd.f32 %v1900, %v2008
  %v2021 = vadd.f32 %v1901, %v1982
  %v2022 = vadd.f32 %v1902, %v2011
  %v2023 = vadd.f32 %v1903, %v1985
  %v2024 = vadd.f32 %v1904, %v2014
  %v2025 = vadd.f32 %v1905, %v1988
  %v2026 = vadd.f32 %v1906, %v2017
  %2027 = vrot.lane.b32.xlu0 %v1353, 113
  %v2028 = vpop.permute.xlu0 %2027
  %2029 = vrot.lane.b32.xlu0 %v1355, 113
  %v2030 = vpop.permute.xlu0 %2029
  %2031 = vrot.lane.b32.xlu0 %v1357, 113
  %v2032 = vpop.permute.xlu0 %2031
  %2033 = vrot.lane.b32.xlu0 %v1359, 113
  %v2034 = vpop.permute.xlu0 %2033
  %2035 = vrot.lane.b32.xlu0 %v1354, 113
  %v2036 = vpop.permute.xlu0 %2035
  %2037 = vrot.lane.b32.xlu0 %v1356, 113
  %v2038 = vpop.permute.xlu0 %2037
  %2039 = vrot.lane.b32.xlu0 %v1358, 113
  %v2040 = vpop.permute.xlu0 %2039
  %2041 = vrot.lane.b32.xlu0 %v1360, 113
  %v2042 = vpop.permute.xlu0 %2041
  %v2043 = vsel %vm723, %v2028, %v2036
  %v2044 = vsel %vm723, %v2030, %v2038
  %v2045 = vsel %vm723, %v2032, %v2040
  %v2046 = vsel %vm723, %v2034, %v2042
  %v2047 = vsel %vm723, %v2036, %v2028
  %v2048 = vsel %vm723, %v2038, %v2030
  %v2049 = vsel %vm723, %v2040, %v2032
  %v2050 = vsel %vm723, %v2042, %v2034
  %v2051 = vld [vmem:[%s732] ss:$8 sm:$0x3]
  %v2053 = vperm.slane %v2051, 0
  %v2054 = vperm.slane %v2051, 1
  %v2057 = vmul.f32 %v2043, %v2053
  %v2058 = vmul.f32 %v2047, %v2054
  %v2059 = vmul.f32 %v2044, %v2053
  %v2060 = vmul.f32 %v2048, %v2054
  %v2061 = vmul.f32 %v2045, %v2053
  %v2062 = vmul.f32 %v2049, %v2054
  %v2063 = vmul.f32 %v2046, %v2053
  %v2064 = vmul.f32 %v2050, %v2054
  %v2065 = vld [vmem:[%s1 + $0xc0] sm:$0xff]
  %v2066 = vld [vmem:[%s1 + $0xc8] sm:$0xff]
  %v2067 = vld [vmem:[%s1 + $0xd0] sm:$0xff]
  %v2068 = vld [vmem:[%s1 + $0xd8] sm:$0xff]
  %v2070 = vsel %vm118, %v2065, 0
  %v2073 = vsel %vm118, %v2066, 0
  %v2076 = vsel %vm118, %v2067, 0
  %v2079 = vsel %vm118, %v2068, 0
  %2081 = vmatpush.msra.mxu0 0.0
  %2082 = vmatpush.msra.mxu0 0.0
  %2083 = vmatpush.msra.mxu0 0.0
  %2084 = vmatpush.msra.mxu0 0.0
  %2085 = vmatpush.msra.mxu0 0.0
  %2086 = vmatpush.msra.mxu0 0.0
  %2087 = vmatpush.msra.mxu0 0.0
  %2088 = vmatpush.msra.mxu0 0.0
  %2089 = vmatpush.msra.mxu0 0.0
  %2090 = vmatpush.msra.mxu0 0.0
  %2091 = vmatpush.msra.mxu0 0.0
  %2092 = vmatpush.msra.mxu0 0.0
  %2093 = vmatpush.msra.mxu0 %v2063
  %2094 = vmatpush.msra.mxu0 %v2061
  %2095 = vmatpush.msra.mxu0 %v2059
  %2096 = vmatpush.msra.mxu0 %v2057
  %2097 = vmatmul.f32.gmra.mxu0 %v2070
  %v2098 = vpop.f32.mrf.mxu0
  %v2099 = vadd.f32 0.0, %v2098
  %2100 = vmatmul.f32.gmra.mxu0 %v2073
  %v2101 = vpop.f32.mrf.mxu0
  %v2102 = vadd.f32 0.0, %v2101
  %2103 = vmatmul.f32.gmra.mxu0 %v2076
  %v2104 = vpop.f32.mrf.mxu0
  %v2105 = vadd.f32 0.0, %v2104
  %2106 = vmatmul.f32.gmra.mxu0 %v2079
  %v2107 = vpop.f32.mrf.mxu0
  %v2108 = vadd.f32 0.0, %v2107
  %2109 = vdwg.mxu0
  %2110 = vmatpush.msra.mxu0 0.0
  %2111 = vmatpush.msra.mxu0 0.0
  %2112 = vmatpush.msra.mxu0 0.0
  %2113 = vmatpush.msra.mxu0 0.0
  %2114 = vmatpush.msra.mxu0 0.0
  %2115 = vmatpush.msra.mxu0 0.0
  %2116 = vmatpush.msra.mxu0 0.0
  %2117 = vmatpush.msra.mxu0 0.0
  %2118 = vmatpush.msra.mxu0 0.0
  %2119 = vmatpush.msra.mxu0 0.0
  %2120 = vmatpush.msra.mxu0 0.0
  %2121 = vmatpush.msra.mxu0 0.0
  %2122 = vmatpush.msra.mxu0 %v2064
  %2123 = vmatpush.msra.mxu0 %v2062
  %2124 = vmatpush.msra.mxu0 %v2060
  %2125 = vmatpush.msra.mxu0 %v2058
  %2126 = vmatmul.f32.gmra.mxu0 %v2070
  %v2127 = vpop.f32.mrf.mxu0
  %v2128 = vadd.f32 0.0, %v2127
  %2129 = vmatmul.f32.gmra.mxu0 %v2073
  %v2130 = vpop.f32.mrf.mxu0
  %v2131 = vadd.f32 0.0, %v2130
  %2132 = vmatmul.f32.gmra.mxu0 %v2076
  %v2133 = vpop.f32.mrf.mxu0
  %v2134 = vadd.f32 0.0, %v2133
  %2135 = vmatmul.f32.gmra.mxu0 %v2079
  %v2136 = vpop.f32.mrf.mxu0
  %v2137 = vadd.f32 0.0, %v2136
  %2138 = vdwg.mxu0
  %v2139 = vadd.f32 %v2019, %v2099
  %v2140 = vadd.f32 %v2020, %v2128
  %v2141 = vadd.f32 %v2021, %v2102
  %v2142 = vadd.f32 %v2022, %v2131
  %v2143 = vadd.f32 %v2023, %v2105
  %v2144 = vadd.f32 %v2024, %v2134
  %v2145 = vadd.f32 %v2025, %v2108
  %v2146 = vadd.f32 %v2026, %v2137
  %2147 = vrot.lane.b32.xlu0 %v1353, 112
  %v2148 = vpop.permute.xlu0 %2147
  %2149 = vrot.lane.b32.xlu0 %v1355, 112
  %v2150 = vpop.permute.xlu0 %2149
  %2151 = vrot.lane.b32.xlu0 %v1357, 112
  %v2152 = vpop.permute.xlu0 %2151
  %2153 = vrot.lane.b32.xlu0 %v1359, 112
  %v2154 = vpop.permute.xlu0 %2153
  %2155 = vrot.lane.b32.xlu0 %v1354, 112
  %v2156 = vpop.permute.xlu0 %2155
  %2157 = vrot.lane.b32.xlu0 %v1356, 112
  %v2158 = vpop.permute.xlu0 %2157
  %2159 = vrot.lane.b32.xlu0 %v1358, 112
  %v2160 = vpop.permute.xlu0 %2159
  %2161 = vrot.lane.b32.xlu0 %v1360, 112
  %v2162 = vpop.permute.xlu0 %2161
  %v2163 = vsel %vm845, %v2148, %v2156
  %v2164 = vsel %vm845, %v2150, %v2158
  %v2165 = vsel %vm845, %v2152, %v2160
  %v2166 = vsel %vm845, %v2154, %v2162
  %v2167 = vsel %vm845, %v2156, %v2148
  %v2168 = vsel %vm845, %v2158, %v2150
  %v2169 = vsel %vm845, %v2160, %v2152
  %v2170 = vsel %vm845, %v2162, %v2154
  %v2171 = vld [vmem:[%s854] ss:$8 sm:$0x3]
  %v2173 = vperm.slane %v2171, 0
  %v2174 = vperm.slane %v2171, 1
  %v2177 = vmul.f32 %v2163, %v2173
  %v2178 = vmul.f32 %v2167, %v2174
  %v2179 = vmul.f32 %v2164, %v2173
  %v2180 = vmul.f32 %v2168, %v2174
  %v2181 = vmul.f32 %v2165, %v2173
  %v2182 = vmul.f32 %v2169, %v2174
  %v2183 = vmul.f32 %v2166, %v2173
  %v2184 = vmul.f32 %v2170, %v2174
  %v2185 = vld [vmem:[%s1 + $0xe0] sm:$0xff]
  %v2186 = vld [vmem:[%s1 + $0xe8] sm:$0xff]
  %v2187 = vld [vmem:[%s1 + $0xf0] sm:$0xff]
  %v2188 = vld [vmem:[%s1 + $0xf8] sm:$0xff]
  %v2190 = vsel %vm118, %v2185, 0
  %v2193 = vsel %vm118, %v2186, 0
  %v2196 = vsel %vm118, %v2187, 0
  %v2199 = vsel %vm118, %v2188, 0
  %2201 = vmatpush.msra.mxu0 0.0
  %2202 = vmatpush.msra.mxu0 0.0
  %2203 = vmatpush.msra.mxu0 0.0
  %2204 = vmatpush.msra.mxu0 0.0
  %2205 = vmatpush.msra.mxu0 0.0
  %2206 = vmatpush.msra.mxu0 0.0
  %2207 = vmatpush.msra.mxu0 0.0
  %2208 = vmatpush.msra.mxu0 0.0
  %2209 = vmatpush.msra.mxu0 0.0
  %2210 = vmatpush.msra.mxu0 0.0
  %2211 = vmatpush.msra.mxu0 0.0
  %2212 = vmatpush.msra.mxu0 0.0
  %2213 = vmatpush.msra.mxu0 %v2183
  %2214 = vmatpush.msra.mxu0 %v2181
  %2215 = vmatpush.msra.mxu0 %v2179
  %2216 = vmatpush.msra.mxu0 %v2177
  %2217 = vmatmul.f32.gmra.mxu0 %v2190
  %v2218 = vpop.f32.mrf.mxu0
  %v2219 = vadd.f32 0.0, %v2218
  %2220 = vmatmul.f32.gmra.mxu0 %v2193
  %v2221 = vpop.f32.mrf.mxu0
  %v2222 = vadd.f32 0.0, %v2221
  %2223 = vmatmul.f32.gmra.mxu0 %v2196
  %v2224 = vpop.f32.mrf.mxu0
  %v2225 = vadd.f32 0.0, %v2224
  %2226 = vmatmul.f32.gmra.mxu0 %v2199
  %v2227 = vpop.f32.mrf.mxu0
  %v2228 = vadd.f32 0.0, %v2227
  %2229 = vdwg.mxu0
  %2230 = vmatpush.msra.mxu0 0.0
  %2231 = vmatpush.msra.mxu0 0.0
  %2232 = vmatpush.msra.mxu0 0.0
  %2233 = vmatpush.msra.mxu0 0.0
  %2234 = vmatpush.msra.mxu0 0.0
  %2235 = vmatpush.msra.mxu0 0.0
  %2236 = vmatpush.msra.mxu0 0.0
  %2237 = vmatpush.msra.mxu0 0.0
  %2238 = vmatpush.msra.mxu0 0.0
  %2239 = vmatpush.msra.mxu0 0.0
  %2240 = vmatpush.msra.mxu0 0.0
  %2241 = vmatpush.msra.mxu0 0.0
  %2242 = vmatpush.msra.mxu0 %v2184
  %2243 = vmatpush.msra.mxu0 %v2182
  %2244 = vmatpush.msra.mxu0 %v2180
  %2245 = vmatpush.msra.mxu0 %v2178
  %2246 = vmatmul.f32.gmra.mxu0 %v2190
  %v2247 = vpop.f32.mrf.mxu0
  %v2248 = vadd.f32 0.0, %v2247
  %2249 = vmatmul.f32.gmra.mxu0 %v2193
  %v2250 = vpop.f32.mrf.mxu0
  %v2251 = vadd.f32 0.0, %v2250
  %2252 = vmatmul.f32.gmra.mxu0 %v2196
  %v2253 = vpop.f32.mrf.mxu0
  %v2254 = vadd.f32 0.0, %v2253
  %2255 = vmatmul.f32.gmra.mxu0 %v2199
  %v2256 = vpop.f32.mrf.mxu0
  %v2257 = vadd.f32 0.0, %v2256
  %2258 = vdwg.mxu0
  %v2259 = vadd.f32 %v2139, %v2219
  %v2260 = vadd.f32 %v2140, %v2248
  %v2261 = vadd.f32 %v2141, %v2222
  %v2262 = vadd.f32 %v2142, %v2251
  %v2263 = vadd.f32 %v2143, %v2225
  %v2264 = vadd.f32 %v2144, %v2254
  %v2265 = vadd.f32 %v2145, %v2228
  %v2266 = vadd.f32 %v2146, %v2257
  %2267 = vrot.lane.b32.xlu0 %v1353, 111
  %v2268 = vpop.permute.xlu0 %2267
  %2269 = vrot.lane.b32.xlu0 %v1355, 111
  %v2270 = vpop.permute.xlu0 %2269
  %2271 = vrot.lane.b32.xlu0 %v1357, 111
  %v2272 = vpop.permute.xlu0 %2271
  %2273 = vrot.lane.b32.xlu0 %v1359, 111
  %v2274 = vpop.permute.xlu0 %2273
  %2275 = vrot.lane.b32.xlu0 %v1354, 111
  %v2276 = vpop.permute.xlu0 %2275
  %2277 = vrot.lane.b32.xlu0 %v1356, 111
  %v2278 = vpop.permute.xlu0 %2277
  %2279 = vrot.lane.b32.xlu0 %v1358, 111
  %v2280 = vpop.permute.xlu0 %2279
  %2281 = vrot.lane.b32.xlu0 %v1360, 111
  %v2282 = vpop.permute.xlu0 %2281
  %v2283 = vsel %vm967, %v2268, %v2276
  %v2284 = vsel %vm967, %v2270, %v2278
  %v2285 = vsel %vm967, %v2272, %v2280
  %v2286 = vsel %vm967, %v2274, %v2282
  %v2287 = vsel %vm967, %v2276, %v2268
  %v2288 = vsel %vm967, %v2278, %v2270
  %v2289 = vsel %vm967, %v2280, %v2272
  %v2290 = vsel %vm967, %v2282, %v2274
  %v2291 = vld [vmem:[%s976] ss:$8 sm:$0x3]
  %v2293 = vperm.slane %v2291, 0
  %v2294 = vperm.slane %v2291, 1
  %v2297 = vmul.f32 %v2283, %v2293
  %v2298 = vmul.f32 %v2287, %v2294
  %v2299 = vmul.f32 %v2284, %v2293
  %v2300 = vmul.f32 %v2288, %v2294
  %v2301 = vmul.f32 %v2285, %v2293
  %v2302 = vmul.f32 %v2289, %v2294
  %v2303 = vmul.f32 %v2286, %v2293
  %v2304 = vmul.f32 %v2290, %v2294
  %v2305 = vld [vmem:[%s1 + $0x100] sm:$0xff]
  %v2306 = vld [vmem:[%s1 + $0x108] sm:$0xff]
  %v2307 = vld [vmem:[%s1 + $0x110] sm:$0xff]
  %v2308 = vld [vmem:[%s1 + $0x118] sm:$0xff]
  %v2310 = vsel %vm118, %v2305, 0
  %v2313 = vsel %vm118, %v2306, 0
  %v2316 = vsel %vm118, %v2307, 0
  %v2319 = vsel %vm118, %v2308, 0
  %2321 = vmatpush.msra.mxu0 0.0
  %2322 = vmatpush.msra.mxu0 0.0
  %2323 = vmatpush.msra.mxu0 0.0
  %2324 = vmatpush.msra.mxu0 0.0
  %2325 = vmatpush.msra.mxu0 0.0
  %2326 = vmatpush.msra.mxu0 0.0
  %2327 = vmatpush.msra.mxu0 0.0
  %2328 = vmatpush.msra.mxu0 0.0
  %2329 = vmatpush.msra.mxu0 0.0
  %2330 = vmatpush.msra.mxu0 0.0
  %2331 = vmatpush.msra.mxu0 0.0
  %2332 = vmatpush.msra.mxu0 0.0
  %2333 = vmatpush.msra.mxu0 %v2303
  %2334 = vmatpush.msra.mxu0 %v2301
  %2335 = vmatpush.msra.mxu0 %v2299
  %2336 = vmatpush.msra.mxu0 %v2297
  %2337 = vmatmul.f32.gmra.mxu0 %v2310
  %v2338 = vpop.f32.mrf.mxu0
  %v2339 = vadd.f32 0.0, %v2338
  %2340 = vmatmul.f32.gmra.mxu0 %v2313
  %v2341 = vpop.f32.mrf.mxu0
  %v2342 = vadd.f32 0.0, %v2341
  %2343 = vmatmul.f32.gmra.mxu0 %v2316
  %v2344 = vpop.f32.mrf.mxu0
  %v2345 = vadd.f32 0.0, %v2344
  %2346 = vmatmul.f32.gmra.mxu0 %v2319
  %v2347 = vpop.f32.mrf.mxu0
  %v2348 = vadd.f32 0.0, %v2347
  %2349 = vdwg.mxu0
  %2350 = vmatpush.msra.mxu0 0.0
  %2351 = vmatpush.msra.mxu0 0.0
  %2352 = vmatpush.msra.mxu0 0.0
  %2353 = vmatpush.msra.mxu0 0.0
  %2354 = vmatpush.msra.mxu0 0.0
  %2355 = vmatpush.msra.mxu0 0.0
  %2356 = vmatpush.msra.mxu0 0.0
  %2357 = vmatpush.msra.mxu0 0.0
  %2358 = vmatpush.msra.mxu0 0.0
  %2359 = vmatpush.msra.mxu0 0.0
  %2360 = vmatpush.msra.mxu0 0.0
  %2361 = vmatpush.msra.mxu0 0.0
  %2362 = vmatpush.msra.mxu0 %v2304
  %2363 = vmatpush.msra.mxu0 %v2302
  %2364 = vmatpush.msra.mxu0 %v2300
  %2365 = vmatpush.msra.mxu0 %v2298
  %2366 = vmatmul.f32.gmra.mxu0 %v2310
  %v2367 = vpop.f32.mrf.mxu0
  %v2368 = vadd.f32 0.0, %v2367
  %2369 = vmatmul.f32.gmra.mxu0 %v2313
  %v2370 = vpop.f32.mrf.mxu0
  %v2371 = vadd.f32 0.0, %v2370
  %2372 = vmatmul.f32.gmra.mxu0 %v2316
  %v2373 = vpop.f32.mrf.mxu0
  %v2374 = vadd.f32 0.0, %v2373
  %2375 = vmatmul.f32.gmra.mxu0 %v2319
  %v2376 = vpop.f32.mrf.mxu0
  %v2377 = vadd.f32 0.0, %v2376
  %2378 = vdwg.mxu0
  %v2379 = vadd.f32 %v2259, %v2339
  %v2380 = vadd.f32 %v2260, %v2368
  %v2381 = vadd.f32 %v2261, %v2342
  %v2382 = vadd.f32 %v2262, %v2371
  %v2383 = vadd.f32 %v2263, %v2345
  %v2384 = vadd.f32 %v2264, %v2374
  %v2385 = vadd.f32 %v2265, %v2348
  %v2386 = vadd.f32 %v2266, %v2377
  %v2387 = vadd.f32 %v2379, %v1076
  %v2388 = vadd.f32 %v2380, %v1076
  %v2389 = vadd.f32 %v2381, %v1081
  %v2390 = vadd.f32 %v2382, %v1081
  %v2391 = vadd.f32 %v2383, %v1086
  %v2392 = vadd.f32 %v2384, %v1086
  %v2393 = vadd.f32 %v2385, %v1091
  %v2394 = vadd.f32 %v2386, %v1091
  %v2395 = vadd.f32 %v2387, %v2388
  %2396 = vadd.xlane.f32.xlu0 %v2395
  %v2397 = vpop.xlane.xlu0 %2396
  %v2398 = vadd.f32 %v2389, %v2390
  %2399 = vadd.xlane.f32.xlu0 %v2398
  %v2400 = vpop.xlane.xlu0 %2399
  %v2401 = vadd.f32 %v2391, %v2392
  %2402 = vadd.xlane.f32.xlu0 %v2401
  %v2403 = vpop.xlane.xlu0 %2402
  %v2404 = vadd.f32 %v2393, %v2394
  %2405 = vadd.xlane.f32.xlu0 %v2404
  %v2406 = vpop.xlane.xlu0 %2405
  %v2407 = vmul.f32 %v2397, %v1119
  %v2408 = vmul.f32 %v2400, %v1119
  %v2409 = vmul.f32 %v2403, %v1119
  %v2410 = vmul.f32 %v2406, %v1119
  %v2411 = vld [vmem:[%s3] sm:$0xff]
  %v2412 = vld [vmem:[%s3 + $0x8] sm:$0xff]
  %v2413 = vld [vmem:[%s3 + $0x10] sm:$0xff]
  %v2414 = vld [vmem:[%s3 + $0x18] sm:$0xff]
  %v2415 = vld [vmem:[%s3] sm:$0x1]
  %v2416 = vmul.f32 %v2411, %v2407
  %v2417 = vmul.f32 %v2412, %v2408
  %v2418 = vmul.f32 %v2413, %v2409
  %v2419 = vmul.f32 %v2414, %v2410
  %v2420 = vsel %vm1129, %v2416, 0.0
  %v2421 = vsel %vm1129, %v2417, 0.0
  %v2422 = vadd.f32 %v2420, %v2421
  %v2423 = vsel %vm1129, %v2418, 0.0
  %v2424 = vadd.f32 %v2422, %v2423
  %v2425 = vsel %vm1129, %v2419, 0.0
  %v2426 = vadd.f32 %v2424, %v2425
  %v2427 = vrot.slane %v2426, 4
  %v2428 = vadd.f32 %v2426, %v2427
  %v2429 = vrot.slane %v2428, 2
  %v2430 = vadd.f32 %v2428, %v2429
  %v2431 = vrot.slane %v2430, 1
  %v2432 = vadd.f32 %v2430, %v2431
  %2434 = vrot.lane.b32.xlu0 %v2415, 124
  %v2435 = vpop.permute.xlu0 %2434
  %v2437 = vadd.f32 %v2432, %v2435
  %v2438 = vmax.f32 %v2437, 0.0
  %v2439 = vperm.slane %v2438, 0
  %2444 = vrot.lane.b32.xlu0 %v2411, 126
  %v2445 = vpop.permute.xlu0 %2444
  %2446 = vrot.lane.b32.xlu0 %v2412, 126
  %v2447 = vpop.permute.xlu0 %2446
  %2448 = vrot.lane.b32.xlu0 %v2413, 126
  %v2449 = vpop.permute.xlu0 %2448
  %2450 = vrot.lane.b32.xlu0 %v2414, 126
  %v2451 = vpop.permute.xlu0 %2450
  %v2456 = vmul.f32 %v2439, %v2445
  %v2457 = vmul.f32 %v2439, %v2447
  %v2458 = vmul.f32 %v2439, %v2449
  %v2459 = vmul.f32 %v2439, %v2451
  %2464 = vrot.lane.b32.xlu0 %v2456, 127
  %v2465 = vpop.permute.xlu0 %2464
  %2466 = vrot.lane.b32.xlu0 %v2457, 127
  %v2467 = vpop.permute.xlu0 %2466
  %2468 = vrot.lane.b32.xlu0 %v2458, 127
  %v2469 = vpop.permute.xlu0 %2468
  %2470 = vrot.lane.b32.xlu0 %v2459, 127
  %v2471 = vpop.permute.xlu0 %2470
  %v2476 = vadd.f32 %v17, %v2465
  %v2477 = vadd.f32 %v18, %v2467
  %v2478 = vadd.f32 %v19, %v2469
  %v2479 = vadd.f32 %v20, %v2471
  %v2480 = vld [vmem:[%s3 + $0x1] sm:$0x1]
  %v2481 = vsel %vm1187, %v2416, 0.0
  %v2482 = vsel %vm1187, %v2417, 0.0
  %v2483 = vadd.f32 %v2481, %v2482
  %v2484 = vsel %vm1187, %v2418, 0.0
  %v2485 = vadd.f32 %v2483, %v2484
  %v2486 = vsel %vm1187, %v2419, 0.0
  %v2487 = vadd.f32 %v2485, %v2486
  %v2488 = vrot.slane %v2487, 4
  %v2489 = vadd.f32 %v2487, %v2488
  %v2490 = vrot.slane %v2489, 2
  %v2491 = vadd.f32 %v2489, %v2490
  %v2492 = vrot.slane %v2491, 1
  %v2493 = vadd.f32 %v2491, %v2492
  %2495 = vrot.lane.b32.xlu0 %v2480, 125
  %v2496 = vpop.permute.xlu0 %2495
  %v2498 = vadd.f32 %v2493, %v2496
  %v2499 = vmax.f32 %v2498, 0.0
  %v2500 = vperm.slane %v2499, 0
  %v2501 = vmul.f32 %v2500, %v2445
  %v2502 = vmul.f32 %v2500, %v2447
  %v2503 = vmul.f32 %v2500, %v2449
  %v2504 = vmul.f32 %v2500, %v2451
  %2509 = vrot.lane.b32.xlu0 %v2501, 126
  %v2510 = vpop.permute.xlu0 %2509
  %2511 = vrot.lane.b32.xlu0 %v2502, 126
  %v2512 = vpop.permute.xlu0 %2511
  %2513 = vrot.lane.b32.xlu0 %v2503, 126
  %v2514 = vpop.permute.xlu0 %2513
  %2515 = vrot.lane.b32.xlu0 %v2504, 126
  %v2516 = vpop.permute.xlu0 %2515
  %v2521 = vadd.f32 %v2476, %v2510
  %v2522 = vadd.f32 %v2477, %v2512
  %v2523 = vadd.f32 %v2478, %v2514
  %v2524 = vadd.f32 %v2479, %v2516
  %v2525 = vxor.u32 %v2521, 2147483648
  %v2526 = vxor.u32 %v2522, 2147483648
  %v2527 = vxor.u32 %v2523, 2147483648
  %v2528 = vxor.u32 %v2524, 2147483648
  %v2529 = vmul.f32 %v2525, 1.442695
  %v2530 = vpow.pop %v2529
  %v2531 = vmul.f32 %v2526, 1.442695
  %v2532 = vpow.pop %v2531
  %v2533 = vmul.f32 %v2527, 1.442695
  %v2534 = vpow.pop %v2533
  %v2535 = vmul.f32 %v2528, 1.442695
  %v2536 = vpow.pop %v2535
  %v2537 = vadd.f32 %v2530, 1.0
  %v2538 = vadd.f32 %v2532, 1.0
  %v2539 = vadd.f32 %v2534, 1.0
  %v2540 = vadd.f32 %v2536, 1.0
  %v2541 = vrcp.pop %v2537
  %v2542 = vmul.f32 %v2537, %v2541
  %v2543 = vsub.f32 1.0, %v2542
  %v2544 = vmul.f32 %v2541, %v2543
  %v2545 = vadd.f32 %v2541, %v2544
  %vm2546 = vweird.f32 %v2537
  %vm2547 = vweird.f32 %v2541
  %vm2548 = vmor %vm2546, %vm2547
  %v2549 = vsel %vm2548, %v2541, %v2545
  %v2550 = vand.u32 2147483647, %v2537
  %vm2551 = vcmp.eq.f32.partialorder %v2550, 8.507059e+37
  %v2552 = vand.u32 %v2537, 2147483648
  %v2553 = vor.u32 1.1754944e-38, %v2552
  %v2554 = vsel %vm2551, %v2553, %v2549
  %v2555 = vmul.f32 1.0, %v2554
  %v2556 = vrcp.pop %v2538
  %v2557 = vmul.f32 %v2538, %v2556
  %v2558 = vsub.f32 1.0, %v2557
  %v2559 = vmul.f32 %v2556, %v2558
  %v2560 = vadd.f32 %v2556, %v2559
  %vm2561 = vweird.f32 %v2538
  %vm2562 = vweird.f32 %v2556
  %vm2563 = vmor %vm2561, %vm2562
  %v2564 = vsel %vm2563, %v2556, %v2560
  %v2565 = vand.u32 2147483647, %v2538
  %vm2566 = vcmp.eq.f32.partialorder %v2565, 8.507059e+37
  %v2567 = vand.u32 %v2538, 2147483648
  %v2568 = vor.u32 1.1754944e-38, %v2567
  %v2569 = vsel %vm2566, %v2568, %v2564
  %v2570 = vmul.f32 1.0, %v2569
  %v2571 = vrcp.pop %v2539
  %v2572 = vmul.f32 %v2539, %v2571
  %v2573 = vsub.f32 1.0, %v2572
  %v2574 = vmul.f32 %v2571, %v2573
  %v2575 = vadd.f32 %v2571, %v2574
  %vm2576 = vweird.f32 %v2539
  %vm2577 = vweird.f32 %v2571
  %vm2578 = vmor %vm2576, %vm2577
  %v2579 = vsel %vm2578, %v2571, %v2575
  %v2580 = vand.u32 2147483647, %v2539
  %vm2581 = vcmp.eq.f32.partialorder %v2580, 8.507059e+37
  %v2582 = vand.u32 %v2539, 2147483648
  %v2583 = vor.u32 1.1754944e-38, %v2582
  %v2584 = vsel %vm2581, %v2583, %v2579
  %v2585 = vmul.f32 1.0, %v2584
  %v2586 = vrcp.pop %v2540
  %v2587 = vmul.f32 %v2540, %v2586
  %v2588 = vsub.f32 1.0, %v2587
  %v2589 = vmul.f32 %v2586, %v2588
  %v2590 = vadd.f32 %v2586, %v2589
  %vm2591 = vweird.f32 %v2540
  %vm2592 = vweird.f32 %v2586
  %vm2593 = vmor %vm2591, %vm2592
  %v2594 = vsel %vm2593, %v2586, %v2590
  %v2595 = vand.u32 2147483647, %v2540
  %vm2596 = vcmp.eq.f32.partialorder %v2595, 8.507059e+37
  %v2597 = vand.u32 %v2540, 2147483648
  %v2598 = vor.u32 1.1754944e-38, %v2597
  %v2599 = vsel %vm2596, %v2598, %v2594
  %v2600 = vmul.f32 1.0, %v2599
  %2602 = vset.pattern.permute.xlu0 1
  %2603 = vperm.xlu0 %2602, %v2555
  %v2604 = vpop.permute.xlu0 %2603
  %2607 = vset.pattern.permute.xlu0 1
  %2608 = vperm.xlu0 %2607, %v2570
  %v2609 = vpop.permute.xlu0 %2608
  %2612 = vset.pattern.permute.xlu0 1
  %2613 = vperm.xlu0 %2612, %v2585
  %v2614 = vpop.permute.xlu0 %2613
  %2617 = vset.pattern.permute.xlu0 1
  %2618 = vperm.xlu0 %2617, %v2600
  %v2619 = vpop.permute.xlu0 %2618
  %v2621 = vmul.f32 %v2387, %v2604
  %v2622 = vmul.f32 %v2388, %v2604
  %v2623 = vmul.f32 %v2389, %v2609
  %v2624 = vmul.f32 %v2390, %v2609
  %v2625 = vmul.f32 %v2391, %v2614
  %v2626 = vmul.f32 %v2392, %v2614
  %v2627 = vmul.f32 %v2393, %v2619
  %v2628 = vmul.f32 %v2394, %v2619
  %v2629 = vmax.f32 %v2621, 0.0
  %v2630 = vmax.f32 %v2622, 0.0
  %v2631 = vmax.f32 %v2623, 0.0
  %v2632 = vmax.f32 %v2624, 0.0
  %v2633 = vmax.f32 %v2625, 0.0
  %v2634 = vmax.f32 %v2626, 0.0
  %v2635 = vmax.f32 %v2627, 0.0
  %v2636 = vmax.f32 %v2628, 0.0
  %s2637 = scalar_lea.vmem %s4, 64
  %2638 = vst [vmem:[%s2637] sm:$0xff] %v2629
  %2639 = vst [vmem:[%s2637 + $0x8] sm:$0xff] %v2630
  %2640 = vst [vmem:[%s2637 + $0x10] sm:$0xff] %v2631
  %2641 = vst [vmem:[%s2637 + $0x18] sm:$0xff] %v2632
  %2642 = vst [vmem:[%s2637 + $0x20] sm:$0xff] %v2633
  %2643 = vst [vmem:[%s2637 + $0x28] sm:$0xff] %v2634
  %2644 = vst [vmem:[%s2637 + $0x30] sm:$0xff] %v2635
  %2645 = vst [vmem:[%s2637 + $0x38] sm:$0xff] %v2636
  // Predicated region
  $region18: #{mobileone_block.1} parent=0 // pred_check
    _
  $region19: #{mobileone_block.1} parent=0 // pred_check_branch
    %2647 = sbr.rel (0) target = $region21
  $region20: #{mobileone_block.1} parent=0 // pred_region
    _
  $region21: #{mobileone_block.1} parent=0 // pred_fallthru
    _
  // Predicated region
  $region22: #{mobileone_block.1} parent=0 // pred_check
    _
  $region23: #{mobileone_block.1} parent=0 // pred_check_branch
    %2649 = sbr.rel (0) target = $region25
  $region24: #{mobileone_block.1} parent=0 // pred_region
    _
  $region25: #{mobileone_block.1} parent=0 // pred_fallthru
    _

</llo_original>
